<compile_context>
chip_gen: v6e
topology: v6e:2x2x1
jax: 0.10.0
libtpu: 0.0.40
codegen_flags: <defaults>
</compile_context>

<pallas_src>
import math
import functools

import jax
import jax.numpy as jnp
from jax import lax
from jax.experimental import pallas as pl
from jax.experimental.pallas import tpu as pltpu


def _mha_kernel(x_ref, wq_ref, bq_ref, wkv_ref, bkv_ref, o_ref, kv_scr, o_scr,
                *, n_heads: int, head_dim: int, q_tile: int, compute_dtype):
    """One grid step = one (batch element, query tile).

    x_ref   : (1, S, D)      input sequence (resident across all q tiles of b)
    wq_ref  : (D, D)         Wq^T, pre-scaled by 1/sqrt(head_dim)   [compute_dtype]
    bq_ref  : (1, D)         bq, pre-scaled                          [f32]
    wkv_ref : (D, 2D)        [Wk^T | Wv^T]                           [compute_dtype]
    bkv_ref : (1, 2D)        [bk | bv]                               [f32]
    o_ref   : (1, TQ, D)     output tile
    kv_scr  : (S, 2D)        cached K|V projection (compute_dtype)
    o_scr   : (TQ, D) f32    per-tile output assembly buffer
    """
    d_model = n_heads * head_dim
    seq_len = x_ref.shape[1]
    qi = pl.program_id(1)

    # --- K/V projection: once per batch element, cached in VMEM scratch -------
    # Chunked over S so the f32 intermediate is only (q_tile, 2D); stored
    # directly into the (S, 2D) scratch in the MXU compute dtype.
    @pl.when(qi == 0)
    def _():
        wkv = wkv_ref[...]                 # (D, 2D)
        bkv = bkv_ref[0]                   # (2D,)  f32

        def project_chunk(si, carry):
            start = pl.multiple_of(si * q_tile, q_tile)
            xs = x_ref[0, pl.ds(start, q_tile), :].astype(compute_dtype)
            kv = jnp.dot(xs, wkv, preferred_element_type=jnp.float32) + bkv
            kv_scr[pl.ds(start, q_tile), :] = kv.astype(kv_scr.dtype)
            return carry

        lax.fori_loop(0, seq_len // q_tile, project_chunk, 0)

    # --- Q projection for this query tile (softmax scale folded into Wq/bq) ---
    q_start = pl.multiple_of(qi * q_tile, q_tile)
    xq = x_ref[0, pl.ds(q_start, q_tile), :].astype(compute_dtype)
    q = jnp.dot(xq, wq_ref[...], preferred_element_type=jnp.float32) + bq_ref[0]
    q = q.astype(compute_dtype)            # MXU operand dtype for the score dot

    # --- Per-head attention (static unroll over heads) -------------------------
    for h in range(n_heads):
        ksl = slice(h * head_dim, (h + 1) * head_dim)
        vsl = slice(d_model + h * head_dim, d_model + (h + 1) * head_dim)
        qh = q[:, ksl]                     # (TQ, hd)
        kh = kv_scr[:, ksl]                # (S, hd)  static ref slice -> one load
        vh = kv_scr[:, vsl]                # (S, hd)

        # scores: contract the last dims of both operands directly (no K transpose)
        scores = lax.dot_general(qh, kh, (((1,), (1,)), ((), ())),
                                 preferred_element_type=jnp.float32)    # (TQ, S)
        m = jnp.max(scores, axis=-1, keepdims=True)
        p = jnp.exp(scores - m)                                         # f32
        denom = jnp.sum(p, axis=-1, keepdims=True)                      # (TQ, 1)

        # un-normalized PV matmul, then normalize the small (TQ, hd) result —
        # S/hd fewer VPU multiplies than scaling the (TQ, S) prob matrix.
        o_h = jnp.dot(p.astype(compute_dtype), vh,
                      preferred_element_type=jnp.float32)               # (TQ, hd)
        o_scr[:, ksl] = o_h * pl.reciprocal(denom, approx=True)         # EUP

    # single lane-dense store of the whole (TQ, D) output tile
    o_ref[0] = o_scr[...].astype(o_ref.dtype)


def multi_head_attention(x, wq, bq, wk, bk, wv, bv, *, n_heads: int,
                         q_tile=None, compute_dtype=None,
                         vmem_limit_bytes=64 * 1024 * 1024):
    B, S, D = x.shape
    assert D % n_heads == 0, "d_model must be divisible by n_heads"
    head_dim = D // n_heads
    scale = 1.0 / math.sqrt(head_dim)

    if compute_dtype is None:
        compute_dtype = x.dtype            # pass jnp.bfloat16 for deployment

    if q_tile is None:
        # 128 matches the MXU row dim on v5e; 256-512 is better on v6e (sweep).
        q_tile = 128 if S % 128 == 0 else S
    assert S % q_tile == 0, "seq_len must be divisible by q_tile"
    nq = S // q_tile

    # Host-side weight prep: pre-transpose (no in-kernel XLU transposes), fuse
    # K/V into one (D, 2D) matmul, fold the softmax scale into the Q projection.
    wq_t = (wq.T * scale).astype(compute_dtype)                            # (D, D)
    bq_s = (bq * scale).reshape(1, D).astype(jnp.float32)                  # (1, D)
    wkv_t = jnp.concatenate([wk.T, wv.T], axis=1).astype(compute_dtype)    # (D, 2D)
    bkv = jnp.concatenate([bk, bv]).reshape(1, 2 * D).astype(jnp.float32)  # (1, 2D)

    kernel = functools.partial(_mha_kernel, n_heads=n_heads, head_dim=head_dim,
                               q_tile=q_tile, compute_dtype=compute_dtype)

    def build(single_buffer_weights: bool):
        def const(b, qi):
            return (0, 0)

        if single_buffer_weights:
            # Grid-invariant blocks: one pipeline buffer is enough (index never
            # changes); the default double buffer is pure VMEM waste.
            wspec = lambda shp: pl.BlockSpec(shp, const, pipeline_mode=pl.Buffered(1))
        else:
            wspec = lambda shp: pl.BlockSpec(shp, const)

        return pl.pallas_call(
            kernel,
            out_shape=jax.ShapeDtypeStruct((B, S, D), x.dtype),
            grid_spec=pltpu.PrefetchScalarGridSpec(
                num_scalar_prefetch=0,
                grid=(B, nq),
                in_specs=[
                    # full sequence per batch element (needed by the qi==0 K/V
                    # projection; DMA'd only when b changes)
                    pl.BlockSpec((1, S, D), lambda b, qi: (b, 0, 0)),
                    wspec((D, D)),          # Wq^T (pre-scaled)
                    wspec((1, D)),          # bq   (pre-scaled, f32)
                    wspec((D, 2 * D)),      # [Wk^T | Wv^T]
                    wspec((1, 2 * D)),      # [bk | bv] (f32)
                ],
                out_specs=pl.BlockSpec((1, q_tile, D), lambda b, qi: (b, qi, 0)),
                scratch_shapes=[
                    pltpu.VMEM((S, 2 * D), compute_dtype),  # cached K|V per batch elem
                    pltpu.VMEM((q_tile, D), jnp.float32),   # output-tile assembly
                ],
            ),
            compiler_params=pltpu.CompilerParams(
                # batch is independent (megacore-shardable); the q-tile axis
                # carries the K/V scratch dependency so it stays "arbitrary".
                # (v7x note: with B==1 this leaves one TC idle — see TODO above.)
                dimension_semantics=("parallel", "arbitrary"),
                vmem_limit_bytes=vmem_limit_bytes,
            ),
        )

    args = (x, wq_t, bq_s, wkv_t, bkv)
    try:
        return build(True)(*args)
    except Exception:
        # pipeline_mode / pl.Buffered(1) not honored on this JAX version:
        # fall back to default double-buffered weight blocks (identical math).
        return build(False)(*args)


def _reference(x, wq, bq, wk, bk, wv, bv, n_heads):
    B, S, D = x.shape
    hd = D // n_heads
    q = x @ wq.T + bq
    k = x @ wk.T + bk
    v = x @ wv.T + bv
    q = q.reshape(B, S, n_heads, hd).transpose(0, 2, 1, 3)
    k = k.reshape(B, S, n_heads, hd).transpose(0, 2, 1, 3)
    v = v.reshape(B, S, n_heads, hd).transpose(0, 2, 1, 3)
    scores = jnp.einsum("bhqd,bhkd->bhqk", q, k) / math.sqrt(hd)
    attn = jax.nn.softmax(scores, axis=-1)
    out = jnp.einsum("bhqk,bhkd->bhqd", attn, v)            # (B, H, S, hd)
    return out.transpose(0, 2, 1, 3).reshape(B, S, D)       # concat heads last dim


if __name__ == "__main__":
    batch, seq_len, d_model, n_heads = 2, 8, 32, 4

    key = jax.random.PRNGKey(0)
    kx, kq, kbq, kk, kbk, kv, kbv = jax.random.split(key, 7)

    x = jax.random.normal(kx, (batch, seq_len, d_model), dtype=jnp.float32)
    lim = 1.0 / math.sqrt(d_model)  # nn.Linear default init range
    wq = jax.random.uniform(kq, (d_model, d_model), minval=-lim, maxval=lim, dtype=jnp.float32)
    bq = jax.random.uniform(kbq, (d_model,), minval=-lim, maxval=lim, dtype=jnp.float32)
    wk = jax.random.uniform(kk, (d_model, d_model), minval=-lim, maxval=lim, dtype=jnp.float32)
    bk = jax.random.uniform(kbk, (d_model,), minval=-lim, maxval=lim, dtype=jnp.float32)
    wv = jax.random.uniform(kv, (d_model, d_model), minval=-lim, maxval=lim, dtype=jnp.float32)
    bv = jax.random.uniform(kbv, (d_model,), minval=-lim, maxval=lim, dtype=jnp.float32)

    ref = _reference(x, wq, bq, wk, bk, wv, bv, n_heads)

    # f32 path (matches the input dtype): tight tolerance — the only approximate
    # op is the EUP reciprocal in the softmax denominator (~2^-12 rel error).
    out = multi_head_attention(x, wq, bq, wk, bk, wv, bv, n_heads=n_heads)
    out = jax.block_until_ready(out)
    assert out.shape == (batch, seq_len, d_model)
    assert jnp.allclose(out, ref, atol=2e-3, rtol=2e-3), "f32 path mismatch vs reference"

    # bf16 MXU path (deployment configuration): bf16 operands / K|V scratch,
    # f32 accumulation — loose tolerance for bf16 rounding of the operands.
    out_bf16 = multi_head_attention(x, wq, bq, wk, bk, wv, bv, n_heads=n_heads,
                                    compute_dtype=jnp.bfloat16)
    out_bf16 = jax.block_until_ready(out_bf16)
    assert jnp.allclose(out_bf16, ref, atol=1e-1, rtol=1e-1), "bf16 path mismatch vs reference"

    print("KERNEL_OK")
</pallas_src>

<mosaic_0001>
module attributes {stable_mosaic.version = 11 : i64} {
  func.func @_mha_kernel(%arg0: i32, %arg1: i32, %arg2: memref<1x8x32xf32, #tpu.memory_space<vmem>>, %arg3: memref<32x32xf32, #tpu.memory_space<vmem>>, %arg4: memref<1x32xf32, #tpu.memory_space<vmem>>, %arg5: memref<32x64xf32, #tpu.memory_space<vmem>>, %arg6: memref<1x64xf32, #tpu.memory_space<vmem>>, %arg7: memref<1x8x32xf32, #tpu.memory_space<vmem>>, %arg8: memref<8x64xf32, #tpu.memory_space<vmem>>, %arg9: memref<8x32xf32, #tpu.memory_space<vmem>>) attributes {dimension_semantics = [#tpu.dimension_semantics<parallel>, #tpu.dimension_semantics<arbitrary>], iteration_bounds = array<i64: 2, 1>, scalar_prefetch = 0 : i64, scratch_operands = 2 : i64, tpu.core_type = #tpu.core_type<tc>, window_params = [{transform_indices = @transform_0, window_bounds = array<i64: 1, 8, 32>}, {pipeline_mode = #tpu.pipeline_mode<synchronous>, transform_indices = @transform_1, window_bounds = array<i64: 32, 32>}, {pipeline_mode = #tpu.pipeline_mode<synchronous>, transform_indices = @transform_2, window_bounds = array<i64: 1, 32>}, {pipeline_mode = #tpu.pipeline_mode<synchronous>, transform_indices = @transform_3, window_bounds = array<i64: 32, 64>}, {pipeline_mode = #tpu.pipeline_mode<synchronous>, transform_indices = @transform_4, window_bounds = array<i64: 1, 64>}, {transform_indices = @transform_5, window_bounds = array<i64: 1, 8, 32>}]} {
    %c0_i32 = arith.constant 0 : i32
    %0 = arith.cmpi eq, %arg1, %c0_i32 : i32
    %1 = arith.extui %0 : i1 to i32
    %c0_i32_0 = arith.constant 0 : i32
    %2 = arith.cmpi ne, %1, %c0_i32_0 : i32
    scf.if %2 {
      %c0_44 = arith.constant 0 : index
      %c0_45 = arith.constant 0 : index
      %83 = vector.load %arg5[%c0_44, %c0_45] : memref<32x64xf32, #tpu.memory_space<vmem>>, vector<32x64xf32>
      %c0_46 = arith.constant 0 : index
      %c0_47 = arith.constant 0 : index
      %84 = vector.load %arg6[%c0_46, %c0_47] : memref<1x64xf32, #tpu.memory_space<vmem>>, vector<1x64xf32>
      %85 = vector.shape_cast %84 : vector<1x64xf32> to vector<64xf32>
      %c0_i32_48 = arith.constant 0 : i32
      %c8_i32_49 = arith.constant 8 : i32
      %86 = arith.muli %c0_i32_48, %c8_i32_49 : i32
      %87 = tpu.assume_multiple %86, 8 : i32
      %c0_50 = arith.constant 0 : index
      %88 = arith.index_cast %87 : i32 to index
      %c0_51 = arith.constant 0 : index
      %89 = vector.load %arg2[%c0_50, %88, %c0_51] : memref<1x8x32xf32, #tpu.memory_space<vmem>>, vector<1x8x32xf32>
      %90 = vector.shape_cast %89 : vector<1x8x32xf32> to vector<8x32xf32>
      %cst_52 = arith.constant dense<0.000000e+00> : vector<8x64xf32>
      %91 = tpu.matmul %90, %83, %cst_52 {dimension_numbers = #tpu.dot_dimension_numbers<[1], [0], [0], [1], [0, 0, 1, 1], [], []>} : vector<8x32xf32>, vector<32x64xf32>, vector<8x64xf32> -> vector<8x64xf32>
      %92 = vector.shape_cast %85 : vector<64xf32> to vector<1x64xf32>
      %93 = vector.broadcast %92 : vector<1x64xf32> to vector<8x64xf32>
      %94 = arith.addf %91, %93 : vector<8x64xf32>
      %95 = arith.index_cast %87 : i32 to index
      %c0_53 = arith.constant 0 : index
      %96 = vector.load %arg8[%95, %c0_53] : memref<8x64xf32, #tpu.memory_space<vmem>>, vector<8x64xf32>
      tpu.vector_store %arg8[%95, %c0_53], %94 {strides = array<i32>} : memref<8x64xf32, #tpu.memory_space<vmem>>, vector<8x64xf32>,
      %c1_i32 = arith.constant 1 : i32
    } else {
    }
    %c8_i32 = arith.constant 8 : i32
    %3 = arith.muli %arg1, %c8_i32 : i32
    %4 = tpu.assume_multiple %3, 8 : i32
    %c0 = arith.constant 0 : index
    %5 = arith.index_cast %4 : i32 to index
    %c0_1 = arith.constant 0 : index
    %6 = vector.load %arg2[%c0, %5, %c0_1] : memref<1x8x32xf32, #tpu.memory_space<vmem>>, vector<1x8x32xf32>
    %7 = vector.shape_cast %6 : vector<1x8x32xf32> to vector<8x32xf32>
    %c0_2 = arith.constant 0 : index
    %c0_3 = arith.constant 0 : index
    %8 = vector.load %arg3[%c0_2, %c0_3] : memref<32x32xf32, #tpu.memory_space<vmem>>, vector<32x32xf32>
    %cst = arith.constant dense<0.000000e+00> : vector<8x32xf32>
    %9 = tpu.matmul %7, %8, %cst {dimension_numbers = #tpu.dot_dimension_numbers<[1], [0], [0], [1], [0, 0, 1, 1], [], []>} : vector<8x32xf32>, vector<32x32xf32>, vector<8x32xf32> -> vector<8x32xf32>
    %c0_4 = arith.constant 0 : index
    %c0_5 = arith.constant 0 : index
    %10 = vector.load %arg4[%c0_4, %c0_5] : memref<1x32xf32, #tpu.memory_space<vmem>>, vector<1x32xf32>
    %11 = vector.shape_cast %10 : vector<1x32xf32> to vector<32xf32>
    %12 = vector.shape_cast %11 : vector<32xf32> to vector<1x32xf32>
    %13 = vector.broadcast %12 : vector<1x32xf32> to vector<8x32xf32>
    %14 = arith.addf %9, %13 : vector<8x32xf32>
    %15 = vector.extract_strided_slice %14 {offsets = [0, 0], sizes = [8, 8], strides = [1, 1]} : vector<8x32xf32> to vector<8x8xf32>
    %c0_6 = arith.constant 0 : index
    %c0_7 = arith.constant 0 : index
    %16 = vector.load %arg8[%c0_6, %c0_7] : memref<8x64xf32, #tpu.memory_space<vmem>>, vector<8x8xf32>
    %c0_8 = arith.constant 0 : index
    %c32 = arith.constant 32 : index
    %17 = vector.load %arg8[%c0_8, %c32] : memref<8x64xf32, #tpu.memory_space<vmem>>, vector<8x8xf32>
    %cst_9 = arith.constant dense<0.000000e+00> : vector<8x8xf32>
    %18 = tpu.matmul %15, %16, %cst_9 {dimension_numbers = #tpu.dot_dimension_numbers<[1], [1], [0], [0], [0, 0, 1, 0], [], []>} : vector<8x8xf32>, vector<8x8xf32>, vector<8x8xf32> -> vector<8x8xf32>
    %cst_10 = arith.constant dense<0xFF800000> : vector<8xf32>
    %19 = vector.multi_reduction <maximumf>, %18, %cst_10 [1] : vector<8x8xf32> to vector<8xf32>
    %20 = vector.shape_cast %19 : vector<8xf32> to vector<8x1xf32>
    %21 = vector.broadcast %20 : vector<8x1xf32> to vector<8x8xf32>
    %22 = arith.subf %18, %21 : vector<8x8xf32>
    %23 = math.exp %22 : vector<8x8xf32>
    %cst_11 = arith.constant dense<0.000000e+00> : vector<8xf32>
    %24 = vector.multi_reduction <add>, %23, %cst_11 [1] : vector<8x8xf32> to vector<8xf32>
    %25 = vector.shape_cast %24 : vector<8xf32> to vector<8x1xf32>
    %cst_12 = arith.constant dense<0.000000e+00> : vector<8x8xf32>
    %26 = tpu.matmul %23, %17, %cst_12 {dimension_numbers = #tpu.dot_dimension_numbers<[1], [0], [0], [1], [0, 0, 1, 1], [], []>} : vector<8x8xf32>, vector<8x8xf32>, vector<8x8xf32> -> vector<8x8xf32>
    %27 = tpu.reciprocal %25 {approx = true} : vector<8x1xf32> -> vector<8x1xf32>
    %28 = vector.broadcast %27 : vector<8x1xf32> to vector<8x8xf32>
    %29 = arith.mulf %26, %28 : vector<8x8xf32>
    %c0_13 = arith.constant 0 : index
    %c0_14 = arith.constant 0 : index
    %30 = vector.load %arg9[%c0_13, %c0_14] : memref<8x32xf32, #tpu.memory_space<vmem>>, vector<8x8xf32>
    tpu.vector_store %arg9[%c0_13, %c0_14], %29 {strides = array<i32>} : memref<8x32xf32, #tpu.memory_space<vmem>>, vector<8x8xf32>,
    %31 = vector.extract_strided_slice %14 {offsets = [0, 8], sizes = [8, 8], strides = [1, 1]} : vector<8x32xf32> to vector<8x8xf32>
    %c0_15 = arith.constant 0 : index
    %c8 = arith.constant 8 : index
    %32 = vector.load %arg8[%c0_15, %c8] : memref<8x64xf32, #tpu.memory_space<vmem>>, vector<8x8xf32>
    %c0_16 = arith.constant 0 : index
    %c40 = arith.constant 40 : index
    %33 = vector.load %arg8[%c0_16, %c40] : memref<8x64xf32, #tpu.memory_space<vmem>>, vector<8x8xf32>
    %cst_17 = arith.constant dense<0.000000e+00> : vector<8x8xf32>
    %34 = tpu.matmul %31, %32, %cst_17 {dimension_numbers = #tpu.dot_dimension_numbers<[1], [1], [0], [0], [0, 0, 1, 0], [], []>} : vector<8x8xf32>, vector<8x8xf32>, vector<8x8xf32> -> vector<8x8xf32>
    %cst_18 = arith.constant dense<0xFF800000> : vector<8xf32>
    %35 = vector.multi_reduction <maximumf>, %34, %cst_18 [1] : vector<8x8xf32> to vector<8xf32>
    %36 = vector.shape_cast %35 : vector<8xf32> to vector<8x1xf32>
    %37 = vector.broadcast %36 : vector<8x1xf32> to vector<8x8xf32>
    %38 = arith.subf %34, %37 : vector<8x8xf32>
    %39 = math.exp %38 : vector<8x8xf32>
    %cst_19 = arith.constant dense<0.000000e+00> : vector<8xf32>
    %40 = vector.multi_reduction <add>, %39, %cst_19 [1] : vector<8x8xf32> to vector<8xf32>
    %41 = vector.shape_cast %40 : vector<8xf32> to vector<8x1xf32>
    %cst_20 = arith.constant dense<0.000000e+00> : vector<8x8xf32>
    %42 = tpu.matmul %39, %33, %cst_20 {dimension_numbers = #tpu.dot_dimension_numbers<[1], [0], [0], [1], [0, 0, 1, 1], [], []>} : vector<8x8xf32>, vector<8x8xf32>, vector<8x8xf32> -> vector<8x8xf32>
    %43 = tpu.reciprocal %41 {approx = true} : vector<8x1xf32> -> vector<8x1xf32>
    %44 = vector.broadcast %43 : vector<8x1xf32> to vector<8x8xf32>
    %45 = arith.mulf %42, %44 : vector<8x8xf32>
    %c0_21 = arith.constant 0 : index
    %c8_22 = arith.constant 8 : index
    %46 = vector.load %arg9[%c0_21, %c8_22] : memref<8x32xf32, #tpu.memory_space<vmem>>, vector<8x8xf32>
    tpu.vector_store %arg9[%c0_21, %c8_22], %45 {strides = array<i32>} : memref<8x32xf32, #tpu.memory_space<vmem>>, vector<8x8xf32>,
    %47 = vector.extract_strided_slice %14 {offsets = [0, 16], sizes = [8, 8], strides = [1, 1]} : vector<8x32xf32> to vector<8x8xf32>
    %c0_23 = arith.constant 0 : index
    %c16 = arith.constant 16 : index
    %48 = vector.load %arg8[%c0_23, %c16] : memref<8x64xf32, #tpu.memory_space<vmem>>, vector<8x8xf32>
    %c0_24 = arith.constant 0 : index
    %c48 = arith.constant 48 : index
    %49 = vector.load %arg8[%c0_24, %c48] : memref<8x64xf32, #tpu.memory_space<vmem>>, vector<8x8xf32>
    %cst_25 = arith.constant dense<0.000000e+00> : vector<8x8xf32>
    %50 = tpu.matmul %47, %48, %cst_25 {dimension_numbers = #tpu.dot_dimension_numbers<[1], [1], [0], [0], [0, 0, 1, 0], [], []>} : vector<8x8xf32>, vector<8x8xf32>, vector<8x8xf32> -> vector<8x8xf32>
    %cst_26 = arith.constant dense<0xFF800000> : vector<8xf32>
    %51 = vector.multi_reduction <maximumf>, %50, %cst_26 [1] : vector<8x8xf32> to vector<8xf32>
    %52 = vector.shape_cast %51 : vector<8xf32> to vector<8x1xf32>
    %53 = vector.broadcast %52 : vector<8x1xf32> to vector<8x8xf32>
    %54 = arith.subf %50, %53 : vector<8x8xf32>
    %55 = math.exp %54 : vector<8x8xf32>
    %cst_27 = arith.constant dense<0.000000e+00> : vector<8xf32>
    %56 = vector.multi_reduction <add>, %55, %cst_27 [1] : vector<8x8xf32> to vector<8xf32>
    %57 = vector.shape_cast %56 : vector<8xf32> to vector<8x1xf32>
    %cst_28 = arith.constant dense<0.000000e+00> : vector<8x8xf32>
    %58 = tpu.matmul %55, %49, %cst_28 {dimension_numbers = #tpu.dot_dimension_numbers<[1], [0], [0], [1], [0, 0, 1, 1], [], []>} : vector<8x8xf32>, vector<8x8xf32>, vector<8x8xf32> -> vector<8x8xf32>
    %59 = tpu.reciprocal %57 {approx = true} : vector<8x1xf32> -> vector<8x1xf32>
    %60 = vector.broadcast %59 : vector<8x1xf32> to vector<8x8xf32>
    %61 = arith.mulf %58, %60 : vector<8x8xf32>
    %c0_29 = arith.constant 0 : index
    %c16_30 = arith.constant 16 : index
    %62 = vector.load %arg9[%c0_29, %c16_30] : memref<8x32xf32, #tpu.memory_space<vmem>>, vector<8x8xf32>
    tpu.vector_store %arg9[%c0_29, %c16_30], %61 {strides = array<i32>} : memref<8x32xf32, #tpu.memory_space<vmem>>, vector<8x8xf32>,
    %63 = vector.extract_strided_slice %14 {offsets = [0, 24], sizes = [8, 8], strides = [1, 1]} : vector<8x32xf32> to vector<8x8xf32>
    %c0_31 = arith.constant 0 : index
    %c24 = arith.constant 24 : index
    %64 = vector.load %arg8[%c0_31, %c24] : memref<8x64xf32, #tpu.memory_space<vmem>>, vector<8x8xf32>
    %c0_32 = arith.constant 0 : index
    %c56 = arith.constant 56 : index
    %65 = vector.load %arg8[%c0_32, %c56] : memref<8x64xf32, #tpu.memory_space<vmem>>, vector<8x8xf32>
    %cst_33 = arith.constant dense<0.000000e+00> : vector<8x8xf32>
    %66 = tpu.matmul %63, %64, %cst_33 {dimension_numbers = #tpu.dot_dimension_numbers<[1], [1], [0], [0], [0, 0, 1, 0], [], []>} : vector<8x8xf32>, vector<8x8xf32>, vector<8x8xf32> -> vector<8x8xf32>
    %cst_34 = arith.constant dense<0xFF800000> : vector<8xf32>
    %67 = vector.multi_reduction <maximumf>, %66, %cst_34 [1] : vector<8x8xf32> to vector<8xf32>
    %68 = vector.shape_cast %67 : vector<8xf32> to vector<8x1xf32>
    %69 = vector.broadcast %68 : vector<8x1xf32> to vector<8x8xf32>
    %70 = arith.subf %66, %69 : vector<8x8xf32>
    %71 = math.exp %70 : vector<8x8xf32>
    %cst_35 = arith.constant dense<0.000000e+00> : vector<8xf32>
    %72 = vector.multi_reduction <add>, %71, %cst_35 [1] : vector<8x8xf32> to vector<8xf32>
    %73 = vector.shape_cast %72 : vector<8xf32> to vector<8x1xf32>
    %cst_36 = arith.constant dense<0.000000e+00> : vector<8x8xf32>
    %74 = tpu.matmul %71, %65, %cst_36 {dimension_numbers = #tpu.dot_dimension_numbers<[1], [0], [0], [1], [0, 0, 1, 1], [], []>} : vector<8x8xf32>, vector<8x8xf32>, vector<8x8xf32> -> vector<8x8xf32>
    %75 = tpu.reciprocal %73 {approx = true} : vector<8x1xf32> -> vector<8x1xf32>
    %76 = vector.broadcast %75 : vector<8x1xf32> to vector<8x8xf32>
    %77 = arith.mulf %74, %76 : vector<8x8xf32>
    %c0_37 = arith.constant 0 : index
    %c24_38 = arith.constant 24 : index
    %78 = vector.load %arg9[%c0_37, %c24_38] : memref<8x32xf32, #tpu.memory_space<vmem>>, vector<8x8xf32>
    tpu.vector_store %arg9[%c0_37, %c24_38], %77 {strides = array<i32>} : memref<8x32xf32, #tpu.memory_space<vmem>>, vector<8x8xf32>,
    %c0_39 = arith.constant 0 : index
    %c0_40 = arith.constant 0 : index
    %79 = vector.load %arg9[%c0_39, %c0_40] : memref<8x32xf32, #tpu.memory_space<vmem>>, vector<8x32xf32>
    %c0_41 = arith.constant 0 : index
    %c0_42 = arith.constant 0 : index
    %c0_43 = arith.constant 0 : index
    %80 = vector.load %arg7[%c0_41, %c0_42, %c0_43] : memref<1x8x32xf32, #tpu.memory_space<vmem>>, vector<1x8x32xf32>
    %81 = vector.shape_cast %80 : vector<1x8x32xf32> to vector<8x32xf32>
    %82 = vector.shape_cast %79 : vector<8x32xf32> to vector<1x8x32xf32>
    tpu.vector_store %arg7[%c0_41, %c0_42, %c0_43], %82 {strides = array<i32>} : memref<1x8x32xf32, #tpu.memory_space<vmem>>, vector<1x8x32xf32>,
    return
  }
  func.func @transform_0(%arg0: i32, %arg1: i32) -> (i32, i32, i32) {
    %c0_i32 = arith.constant 0 : i32
    %c0_i32_0 = arith.constant 0 : i32
    %c0_i32_1 = arith.constant 0 : i32
    return %arg0, %c0_i32, %c0_i32_0 : i32, i32, i32
  }
  func.func @transform_1(%arg0: i32, %arg1: i32) -> (i32, i32) {
    %c0_i32 = arith.constant 0 : i32
    %c0_i32_0 = arith.constant 0 : i32
    %c0_i32_1 = arith.constant 0 : i32
    return %c0_i32, %c0_i32_0 : i32, i32
  }
  func.func @transform_2(%arg0: i32, %arg1: i32) -> (i32, i32) {
    %c0_i32 = arith.constant 0 : i32
    %c0_i32_0 = arith.constant 0 : i32
    %c0_i32_1 = arith.constant 0 : i32
    return %c0_i32, %c0_i32_0 : i32, i32
  }
  func.func @transform_3(%arg0: i32, %arg1: i32) -> (i32, i32) {
    %c0_i32 = arith.constant 0 : i32
    %c0_i32_0 = arith.constant 0 : i32
    %c0_i32_1 = arith.constant 0 : i32
    return %c0_i32, %c0_i32_0 : i32, i32
  }
  func.func @transform_4(%arg0: i32, %arg1: i32) -> (i32, i32) {
    %c0_i32 = arith.constant 0 : i32
    %c0_i32_0 = arith.constant 0 : i32
    %c0_i32_1 = arith.constant 0 : i32
    return %c0_i32, %c0_i32_0 : i32, i32
  }
  func.func @transform_5(%arg0: i32, %arg1: i32) -> (i32, i32, i32) {
    %c0_i32 = arith.constant 0 : i32
    %c0_i32_0 = arith.constant 0 : i32
    return %arg0, %arg1, %c0_i32 : i32, i32, i32
  }
}

module attributes {stable_mosaic.version = 11 : i64} {
  func.func @_mha_kernel(%arg0: i32, %arg1: i32, %arg2: memref<1x8x32xf32, #tpu.memory_space<vmem>>, %arg3: memref<32x32xf32, #tpu.memory_space<vmem>>, %arg4: memref<1x32xf32, #tpu.memory_space<vmem>>, %arg5: memref<32x64xf32, #tpu.memory_space<vmem>>, %arg6: memref<1x64xf32, #tpu.memory_space<vmem>>, %arg7: memref<1x8x32xf32, #tpu.memory_space<vmem>>, %arg8: memref<8x64xf32, #tpu.memory_space<vmem>>, %arg9: memref<8x32xf32, #tpu.memory_space<vmem>>) attributes {dimension_semantics = [#tpu.dimension_semantics<parallel>, #tpu.dimension_semantics<arbitrary>], iteration_bounds = array<i64: 2, 1>, scalar_prefetch = 0 : i64, scratch_operands = 2 : i64, tpu.core_type = #tpu.core_type<tc>, window_params = [{transform_indices = @transform_0, window_bounds = array<i64: 1, 8, 32>}, {pipeline_mode = #tpu.pipeline_mode<synchronous>, transform_indices = @transform_1, window_bounds = array<i64: 32, 32>}, {pipeline_mode = #tpu.pipeline_mode<synchronous>, transform_indices = @transform_2, window_bounds = array<i64: 1, 32>}, {pipeline_mode = #tpu.pipeline_mode<synchronous>, transform_indices = @transform_3, window_bounds = array<i64: 32, 64>}, {pipeline_mode = #tpu.pipeline_mode<synchronous>, transform_indices = @transform_4, window_bounds = array<i64: 1, 64>}, {transform_indices = @transform_5, window_bounds = array<i64: 1, 8, 32>}]} {
    %c0_i32 = arith.constant 0 : i32
    %0 = arith.cmpi eq, %arg1, %c0_i32 : i32
    %1 = arith.extui %0 : i1 to i32
    %c0_i32_0 = arith.constant 0 : i32
    %2 = arith.cmpi ne, %1, %c0_i32_0 : i32
    scf.if %2 {
      %c0_44 = arith.constant 0 : index
      %c0_45 = arith.constant 0 : index
      %83 = vector.load %arg5[%c0_44, %c0_45] : memref<32x64xf32, #tpu.memory_space<vmem>>, vector<32x64xf32>
      %c0_46 = arith.constant 0 : index
      %c0_47 = arith.constant 0 : index
      %84 = vector.load %arg6[%c0_46, %c0_47] : memref<1x64xf32, #tpu.memory_space<vmem>>, vector<1x64xf32>
      %85 = vector.shape_cast %84 : vector<1x64xf32> to vector<64xf32>
      %c0_i32_48 = arith.constant 0 : i32
      %c8_i32_49 = arith.constant 8 : i32
      %86 = arith.muli %c0_i32_48, %c8_i32_49 : i32
      %87 = tpu.assume_multiple %86, 8 : i32
      %c0_50 = arith.constant 0 : index
      %88 = arith.index_cast %87 : i32 to index
      %c0_51 = arith.constant 0 : index
      %89 = vector.load %arg2[%c0_50, %88, %c0_51] : memref<1x8x32xf32, #tpu.memory_space<vmem>>, vector<1x8x32xf32>
      %90 = vector.shape_cast %89 : vector<1x8x32xf32> to vector<8x32xf32>
      %cst_52 = arith.constant dense<0.000000e+00> : vector<8x64xf32>
      %91 = tpu.matmul %90, %83, %cst_52 {dimension_numbers = #tpu.dot_dimension_numbers<[1], [0], [0], [1], [0, 0, 1, 1], [], []>} : vector<8x32xf32>, vector<32x64xf32>, vector<8x64xf32> -> vector<8x64xf32>
      %92 = vector.shape_cast %85 : vector<64xf32> to vector<1x64xf32>
      %93 = vector.broadcast %92 : vector<1x64xf32> to vector<8x64xf32>
      %94 = arith.addf %91, %93 : vector<8x64xf32>
      %95 = arith.index_cast %87 : i32 to index
      %c0_53 = arith.constant 0 : index
      %96 = vector.load %arg8[%95, %c0_53] : memref<8x64xf32, #tpu.memory_space<vmem>>, vector<8x64xf32>
      tpu.vector_store %arg8[%95, %c0_53], %94 {strides = array<i32>} : memref<8x64xf32, #tpu.memory_space<vmem>>, vector<8x64xf32>,
      %c1_i32 = arith.constant 1 : i32
    } else {
    }
    %c8_i32 = arith.constant 8 : i32
    %3 = arith.muli %arg1, %c8_i32 : i32
    %4 = tpu.assume_multiple %3, 8 : i32
    %c0 = arith.constant 0 : index
    %5 = arith.index_cast %4 : i32 to index
    %c0_1 = arith.constant 0 : index
    %6 = vector.load %arg2[%c0, %5, %c0_1] : memref<1x8x32xf32, #tpu.memory_space<vmem>>, vector<1x8x32xf32>
    %7 = vector.shape_cast %6 : vector<1x8x32xf32> to vector<8x32xf32>
    %c0_2 = arith.constant 0 : index
    %c0_3 = arith.constant 0 : index
    %8 = vector.load %arg3[%c0_2, %c0_3] : memref<32x32xf32, #tpu.memory_space<vmem>>, vector<32x32xf32>
    %cst = arith.constant dense<0.000000e+00> : vector<8x32xf32>
    %9 = tpu.matmul %7, %8, %cst {dimension_numbers = #tpu.dot_dimension_numbers<[1], [0], [0], [1], [0, 0, 1, 1], [], []>} : vector<8x32xf32>, vector<32x32xf32>, vector<8x32xf32> -> vector<8x32xf32>
    %c0_4 = arith.constant 0 : index
    %c0_5 = arith.constant 0 : index
    %10 = vector.load %arg4[%c0_4, %c0_5] : memref<1x32xf32, #tpu.memory_space<vmem>>, vector<1x32xf32>
    %11 = vector.shape_cast %10 : vector<1x32xf32> to vector<32xf32>
    %12 = vector.shape_cast %11 : vector<32xf32> to vector<1x32xf32>
    %13 = vector.broadcast %12 : vector<1x32xf32> to vector<8x32xf32>
    %14 = arith.addf %9, %13 : vector<8x32xf32>
    %15 = vector.extract_strided_slice %14 {offsets = [0, 0], sizes = [8, 8], strides = [1, 1]} : vector<8x32xf32> to vector<8x8xf32>
    %c0_6 = arith.constant 0 : index
    %c0_7 = arith.constant 0 : index
    %16 = vector.load %arg8[%c0_6, %c0_7] : memref<8x64xf32, #tpu.memory_space<vmem>>, vector<8x8xf32>
    %c0_8 = arith.constant 0 : index
    %c32 = arith.constant 32 : index
    %17 = vector.load %arg8[%c0_8, %c32] : memref<8x64xf32, #tpu.memory_space<vmem>>, vector<8x8xf32>
    %cst_9 = arith.constant dense<0.000000e+00> : vector<8x8xf32>
    %18 = tpu.matmul %15, %16, %cst_9 {dimension_numbers = #tpu.dot_dimension_numbers<[1], [1], [0], [0], [0, 0, 1, 0], [], []>} : vector<8x8xf32>, vector<8x8xf32>, vector<8x8xf32> -> vector<8x8xf32>
    %cst_10 = arith.constant dense<0xFF800000> : vector<8xf32>
    %19 = vector.multi_reduction <maximumf>, %18, %cst_10 [1] : vector<8x8xf32> to vector<8xf32>
    %20 = vector.shape_cast %19 : vector<8xf32> to vector<8x1xf32>
    %21 = vector.broadcast %20 : vector<8x1xf32> to vector<8x8xf32>
    %22 = arith.subf %18, %21 : vector<8x8xf32>
    %23 = math.exp %22 : vector<8x8xf32>
    %cst_11 = arith.constant dense<0.000000e+00> : vector<8xf32>
    %24 = vector.multi_reduction <add>, %23, %cst_11 [1] : vector<8x8xf32> to vector<8xf32>
    %25 = vector.shape_cast %24 : vector<8xf32> to vector<8x1xf32>
    %cst_12 = arith.constant dense<0.000000e+00> : vector<8x8xf32>
    %26 = tpu.matmul %23, %17, %cst_12 {dimension_numbers = #tpu.dot_dimension_numbers<[1], [0], [0], [1], [0, 0, 1, 1], [], []>} : vector<8x8xf32>, vector<8x8xf32>, vector<8x8xf32> -> vector<8x8xf32>
    %27 = tpu.reciprocal %25 {approx = true} : vector<8x1xf32> -> vector<8x1xf32>
    %28 = vector.broadcast %27 : vector<8x1xf32> to vector<8x8xf32>
    %29 = arith.mulf %26, %28 : vector<8x8xf32>
    %c0_13 = arith.constant 0 : index
    %c0_14 = arith.constant 0 : index
    %30 = vector.load %arg9[%c0_13, %c0_14] : memref<8x32xf32, #tpu.memory_space<vmem>>, vector<8x8xf32>
    tpu.vector_store %arg9[%c0_13, %c0_14], %29 {strides = array<i32>} : memref<8x32xf32, #tpu.memory_space<vmem>>, vector<8x8xf32>,
    %31 = vector.extract_strided_slice %14 {offsets = [0, 8], sizes = [8, 8], strides = [1, 1]} : vector<8x32xf32> to vector<8x8xf32>
    %c0_15 = arith.constant 0 : index
    %c8 = arith.constant 8 : index
    %32 = vector.load %arg8[%c0_15, %c8] : memref<8x64xf32, #tpu.memory_space<vmem>>, vector<8x8xf32>
    %c0_16 = arith.constant 0 : index
    %c40 = arith.constant 40 : index
    %33 = vector.load %arg8[%c0_16, %c40] : memref<8x64xf32, #tpu.memory_space<vmem>>, vector<8x8xf32>
    %cst_17 = arith.constant dense<0.000000e+00> : vector<8x8xf32>
    %34 = tpu.matmul %31, %32, %cst_17 {dimension_numbers = #tpu.dot_dimension_numbers<[1], [1], [0], [0], [0, 0, 1, 0], [], []>} : vector<8x8xf32>, vector<8x8xf32>, vector<8x8xf32> -> vector<8x8xf32>
    %cst_18 = arith.constant dense<0xFF800000> : vector<8xf32>
    %35 = vector.multi_reduction <maximumf>, %34, %cst_18 [1] : vector<8x8xf32> to vector<8xf32>
    %36 = vector.shape_cast %35 : vector<8xf32> to vector<8x1xf32>
    %37 = vector.broadcast %36 : vector<8x1xf32> to vector<8x8xf32>
    %38 = arith.subf %34, %37 : vector<8x8xf32>
    %39 = math.exp %38 : vector<8x8xf32>
    %cst_19 = arith.constant dense<0.000000e+00> : vector<8xf32>
    %40 = vector.multi_reduction <add>, %39, %cst_19 [1] : vector<8x8xf32> to vector<8xf32>
    %41 = vector.shape_cast %40 : vector<8xf32> to vector<8x1xf32>
    %cst_20 = arith.constant dense<0.000000e+00> : vector<8x8xf32>
    %42 = tpu.matmul %39, %33, %cst_20 {dimension_numbers = #tpu.dot_dimension_numbers<[1], [0], [0], [1], [0, 0, 1, 1], [], []>} : vector<8x8xf32>, vector<8x8xf32>, vector<8x8xf32> -> vector<8x8xf32>
    %43 = tpu.reciprocal %41 {approx = true} : vector<8x1xf32> -> vector<8x1xf32>
    %44 = vector.broadcast %43 : vector<8x1xf32> to vector<8x8xf32>
    %45 = arith.mulf %42, %44 : vector<8x8xf32>
    %c0_21 = arith.constant 0 : index
    %c8_22 = arith.constant 8 : index
    %46 = vector.load %arg9[%c0_21, %c8_22] : memref<8x32xf32, #tpu.memory_space<vmem>>, vector<8x8xf32>
    tpu.vector_store %arg9[%c0_21, %c8_22], %45 {strides = array<i32>} : memref<8x32xf32, #tpu.memory_space<vmem>>, vector<8x8xf32>,
    %47 = vector.extract_strided_slice %14 {offsets = [0, 16], sizes = [8, 8], strides = [1, 1]} : vector<8x32xf32> to vector<8x8xf32>
    %c0_23 = arith.constant 0 : index
    %c16 = arith.constant 16 : index
    %48 = vector.load %arg8[%c0_23, %c16] : memref<8x64xf32, #tpu.memory_space<vmem>>, vector<8x8xf32>
    %c0_24 = arith.constant 0 : index
    %c48 = arith.constant 48 : index
    %49 = vector.load %arg8[%c0_24, %c48] : memref<8x64xf32, #tpu.memory_space<vmem>>, vector<8x8xf32>
    %cst_25 = arith.constant dense<0.000000e+00> : vector<8x8xf32>
    %50 = tpu.matmul %47, %48, %cst_25 {dimension_numbers = #tpu.dot_dimension_numbers<[1], [1], [0], [0], [0, 0, 1, 0], [], []>} : vector<8x8xf32>, vector<8x8xf32>, vector<8x8xf32> -> vector<8x8xf32>
    %cst_26 = arith.constant dense<0xFF800000> : vector<8xf32>
    %51 = vector.multi_reduction <maximumf>, %50, %cst_26 [1] : vector<8x8xf32> to vector<8xf32>
    %52 = vector.shape_cast %51 : vector<8xf32> to vector<8x1xf32>
    %53 = vector.broadcast %52 : vector<8x1xf32> to vector<8x8xf32>
    %54 = arith.subf %50, %53 : vector<8x8xf32>
    %55 = math.exp %54 : vector<8x8xf32>
    %cst_27 = arith.constant dense<0.000000e+00> : vector<8xf32>
    %56 = vector.multi_reduction <add>, %55, %cst_27 [1] : vector<8x8xf32> to vector<8xf32>
    %57 = vector.shape_cast %56 : vector<8xf32> to vector<8x1xf32>
    %cst_28 = arith.constant dense<0.000000e+00> : vector<8x8xf32>
    %58 = tpu.matmul %55, %49, %cst_28 {dimension_numbers = #tpu.dot_dimension_numbers<[1], [0], [0], [1], [0, 0, 1, 1], [], []>} : vector<8x8xf32>, vector<8x8xf32>, vector<8x8xf32> -> vector<8x8xf32>
    %59 = tpu.reciprocal %57 {approx = true} : vector<8x1xf32> -> vector<8x1xf32>
    %60 = vector.broadcast %59 : vector<8x1xf32> to vector<8x8xf32>
    %61 = arith.mulf %58, %60 : vector<8x8xf32>
    %c0_29 = arith.constant 0 : index
    %c16_30 = arith.constant 16 : index
    %62 = vector.load %arg9[%c0_29, %c16_30] : memref<8x32xf32, #tpu.memory_space<vmem>>, vector<8x8xf32>
    tpu.vector_store %arg9[%c0_29, %c16_30], %61 {strides = array<i32>} : memref<8x32xf32, #tpu.memory_space<vmem>>, vector<8x8xf32>,
    %63 = vector.extract_strided_slice %14 {offsets = [0, 24], sizes = [8, 8], strides = [1, 1]} : vector<8x32xf32> to vector<8x8xf32>
    %c0_31 = arith.constant 0 : index
    %c24 = arith.constant 24 : index
    %64 = vector.load %arg8[%c0_31, %c24] : memref<8x64xf32, #tpu.memory_space<vmem>>, vector<8x8xf32>
    %c0_32 = arith.constant 0 : index
    %c56 = arith.constant 56 : index
    %65 = vector.load %arg8[%c0_32, %c56] : memref<8x64xf32, #tpu.memory_space<vmem>>, vector<8x8xf32>
    %cst_33 = arith.constant dense<0.000000e+00> : vector<8x8xf32>
    %66 = tpu.matmul %63, %64, %cst_33 {dimension_numbers = #tpu.dot_dimension_numbers<[1], [1], [0], [0], [0, 0, 1, 0], [], []>} : vector<8x8xf32>, vector<8x8xf32>, vector<8x8xf32> -> vector<8x8xf32>
    %cst_34 = arith.constant dense<0xFF800000> : vector<8xf32>
    %67 = vector.multi_reduction <maximumf>, %66, %cst_34 [1] : vector<8x8xf32> to vector<8xf32>
    %68 = vector.shape_cast %67 : vector<8xf32> to vector<8x1xf32>
    %69 = vector.broadcast %68 : vector<8x1xf32> to vector<8x8xf32>
    %70 = arith.subf %66, %69 : vector<8x8xf32>
    %71 = math.exp %70 : vector<8x8xf32>
    %cst_35 = arith.constant dense<0.000000e+00> : vector<8xf32>
    %72 = vector.multi_reduction <add>, %71, %cst_35 [1] : vector<8x8xf32> to vector<8xf32>
    %73 = vector.shape_cast %72 : vector<8xf32> to vector<8x1xf32>
    %cst_36 = arith.constant dense<0.000000e+00> : vector<8x8xf32>
    %74 = tpu.matmul %71, %65, %cst_36 {dimension_numbers = #tpu.dot_dimension_numbers<[1], [0], [0], [1], [0, 0, 1, 1], [], []>} : vector<8x8xf32>, vector<8x8xf32>, vector<8x8xf32> -> vector<8x8xf32>
    %75 = tpu.reciprocal %73 {approx = true} : vector<8x1xf32> -> vector<8x1xf32>
    %76 = vector.broadcast %75 : vector<8x1xf32> to vector<8x8xf32>
    %77 = arith.mulf %74, %76 : vector<8x8xf32>
    %c0_37 = arith.constant 0 : index
    %c24_38 = arith.constant 24 : index
    %78 = vector.load %arg9[%c0_37, %c24_38] : memref<8x32xf32, #tpu.memory_space<vmem>>, vector<8x8xf32>
    tpu.vector_store %arg9[%c0_37, %c24_38], %77 {strides = array<i32>} : memref<8x32xf32, #tpu.memory_space<vmem>>, vector<8x8xf32>,
    %c0_39 = arith.constant 0 : index
    %c0_40 = arith.constant 0 : index
    %79 = vector.load %arg9[%c0_39, %c0_40] : memref<8x32xf32, #tpu.memory_space<vmem>>, vector<8x32xf32>
    %c0_41 = arith.constant 0 : index
    %c0_42 = arith.constant 0 : index
    %c0_43 = arith.constant 0 : index
    %80 = vector.load %arg7[%c0_41, %c0_42, %c0_43] : memref<1x8x32xf32, #tpu.memory_space<vmem>>, vector<1x8x32xf32>
    %81 = vector.shape_cast %80 : vector<1x8x32xf32> to vector<8x32xf32>
    %82 = vector.shape_cast %79 : vector<8x32xf32> to vector<1x8x32xf32>
    tpu.vector_store %arg7[%c0_41, %c0_42, %c0_43], %82 {strides = array<i32>} : memref<1x8x32xf32, #tpu.memory_space<vmem>>, vector<1x8x32xf32>,
    return
  }
  func.func @transform_0(%arg0: i32, %arg1: i32) -> (i32, i32, i32) {
    %c0_i32 = arith.constant 0 : i32
    %c0_i32_0 = arith.constant 0 : i32
    %c0_i32_1 = arith.constant 0 : i32
    return %arg0, %c0_i32, %c0_i32_0 : i32, i32, i32
  }
  func.func @transform_1(%arg0: i32, %arg1: i32) -> (i32, i32) {
    %c0_i32 = arith.constant 0 : i32
    %c0_i32_0 = arith.constant 0 : i32
    %c0_i32_1 = arith.constant 0 : i32
    return %c0_i32, %c0_i32_0 : i32, i32
  }
  func.func @transform_2(%arg0: i32, %arg1: i32) -> (i32, i32) {
    %c0_i32 = arith.constant 0 : i32
    %c0_i32_0 = arith.constant 0 : i32
    %c0_i32_1 = arith.constant 0 : i32
    return %c0_i32, %c0_i32_0 : i32, i32
  }
  func.func @transform_3(%arg0: i32, %arg1: i32) -> (i32, i32) {
    %c0_i32 = arith.constant 0 : i32
    %c0_i32_0 = arith.constant 0 : i32
    %c0_i32_1 = arith.constant 0 : i32
    return %c0_i32, %c0_i32_0 : i32, i32
  }
  func.func @transform_4(%arg0: i32, %arg1: i32) -> (i32, i32) {
    %c0_i32 = arith.constant 0 : i32
    %c0_i32_0 = arith.constant 0 : i32
    %c0_i32_1 = arith.constant 0 : i32
    return %c0_i32, %c0_i32_0 : i32, i32
  }
  func.func @transform_5(%arg0: i32, %arg1: i32) -> (i32, i32, i32) {
    %c0_i32 = arith.constant 0 : i32
    %c0_i32_0 = arith.constant 0 : i32
    return %arg0, %arg1, %c0_i32 : i32, i32, i32
  }
}

</mosaic_0001>

<llo_original>
// kernel: tpu_custom_call.1
$region0: #{tpu_custom_call.1}
  #allocation0 [shape = 'u32[]', space=smem, size = 0x4, offset = 0x4, fixed_abs, tag = 'smem constant byte address 0x4 - core index']
  #allocation1 [shape = 'u32[144,128]{1,0:T(1,128)}', space=vmem, size = 0x12000, scoped, tag = 'internal scratch']
  #allocation2 [shape = 'f32[8,64]{1,0:T(8,128)}', space=vmem, size = 0x1000, scoped, tag = 'scratch operand']
  #allocation3 [shape = 'f32[8,32]{1,0:T(8,128)}', space=vmem, size = 0x1000, scoped, tag = 'scratch operand']
  %s0 = inlined_call_operand.hbm [shape: f32[2,8,32], index: 0, kind: input, shape index: {}]
  %s1 = inlined_call_operand.hbm [shape: f32[32,32], index: 1, kind: input, shape index: {}]
  %s2 = inlined_call_operand.vmem [shape: f32[1,32], index: 2, kind: input, shape index: {}]
  %s3 = inlined_call_operand.hbm [shape: f32[32,64], index: 3, kind: input, shape index: {}]
  %s4 = inlined_call_operand.vmem [shape: f32[1,64], index: 4, kind: input, shape index: {}]
  %s5 = inlined_call_operand.hbm [shape: f32[2,8,32], index: 5, kind: output, shape index: {}]
  %s6 = sld [smem:[#allocation0]]
  $region69: #{tpu_custom_call.1} parent=0
    _
  %s8 = ssub.s32 1, %s6
  %s9 = scalar_select 0, %s8, %s6
  $region1: #{tpu_custom_call.1} parent=0
    #allocation4 [shape = 'u8[8192]{0}', space=vmem, size = 0x2000, scoped, tag = 'input window, operand 0']
    #allocation5 [shape = 's32[2]{0}', space=sflag, size = 0x8, scoped, tag = 'scoped memory for tpu_custom_call.1']
    #allocation6 [shape = 's32[2]{0}', space=sflag, size = 0x8, scoped, tag = 'scoped memory for tpu_custom_call.1']
    #allocation7 [shape = 'u8[16384]{0}', space=vmem, size = 0x4000, scoped, tag = 'input window, operand 1, single buffered']
    #allocation8 [shape = 's32[1]{0}', space=sflag, size = 0x4, scoped, tag = 'scoped memory for tpu_custom_call.1']
    #allocation9 [shape = 'u8[16384]{0}', space=vmem, size = 0x4000, scoped, tag = 'input window, operand 3, single buffered']
    #allocation10 [shape = 'u8[8192]{0}', space=vmem, size = 0x2000, scoped, tag = 'output window, operand 0']
    %10 = vsyncpa [#allocation5], 0
    %s11 = scalar_lea.sflag [#allocation5], 1
    %12 = vsyncpa %s11, 0
    %13 = vsyncpa [#allocation8], 0
    %14 = vsyncpa [#allocation6], 0
    %s15 = scalar_lea.sflag [#allocation6], 1
    %16 = vsyncpa %s15, 0
    loop: start=0, step=1, limit=4
    $region2: #{tpu_custom_call.1} parent=1 // loop_pre_header
      _
    $region3: #{tpu_custom_call.1} parent=1 // loop_header
      %s18 = sphi 0, %s22
      %p19 = scmp.ge.s32.totalorder %s18, 4
      %s25 = sphi 0, %s37
      %s26 = sphi 0, %s33
      %s27 = sphi 0, %s25
      %s28 = sphi 0, %s26
      %s29 = sphi 0, %s27
      %s30 = sphi 0, %s28
      %s40 = sphi 0, %s42
      %s43 = sphi 0, %s40
      %s44 = sphi 0, %s43
      %s60 = sphi 0, %s44
      %s64 = sphi 0, %s64
      %s66 = sphi 0, %s64
      %s67 = sphi 0, %s66
      %s81 = sphi 0, %s67
      %s85 = sphi 0, %s85
      %s87 = sphi 0, %s85
      %s88 = sphi 0, %s87
      %s102 = sphi 0, %s88
      %s106 = sphi 0, %s106
      %s108 = sphi 0, %s106
      %s109 = sphi 0, %s108
      %s123 = sphi 0, %s109
      %s127 = sphi 0, %s127
      %s129 = sphi 0, %s127
      %s130 = sphi 0, %s129
      %s144 = sphi 0, %s130
      %s152 = sphi 0, %s154
      %s155 = sphi 0, %s152
      %s156 = sphi 0, %s155
      %s172 = sphi 0, %s156
    $region4: #{tpu_custom_call.1} parent=1 // loop_header_branch
      %21 = sbr.rel (%p19) target = $region8
    $region5: #{tpu_custom_call.1} parent=1 // loop_body
      %s23 = ssub.s32 %s18, 1
      %s24 = ssub.s32 %s18, 2
      %s31 = sadd.s32 1, %s26
      %p32 = scmp.ge.s32.totalorder %s31, 1
      %s33 = scalar_select %p32, 0, %s31
      %s34 = sadd.s32 1, %s25
      %s35 = scalar_select %p32, %s34, %s25
      %p36 = scmp.ge.s32.totalorder %s35, 2
      %s37 = scalar_select %p36, 0, %s35
      %s38 = ssub.s32 %s25, %s37
      %p39 = scmp.eq.s32.totalorder %s38, 0
      %s41 = sadd.s32 %s40, 1
      %s42 = scalar_select %p39, %s40, %s41
      %p45 = pneg %p39
      %p46 = scmp.eq.s32.totalorder %s18, 1
      %p47 = por %p45, %p46
      %p48 = scmp.ne.s32.totalorder %s40, %s43
      %p49 = scmp.eq.s32.totalorder %s18, 0
      %p50 = por %p48, %p49
      %p51 = scmp.ne.s32.totalorder %s40, %s43
      %p52 = scmp.eq.s32.totalorder %s23, 1
      %p53 = por %p51, %p52
      %p54 = scmp.ne.s32.totalorder %s43, %s44
      %p55 = scmp.eq.s32.totalorder %s23, 0
      %p56 = por %p54, %p55
      %p57 = scmp.ne.s32.totalorder %s43, %s44
      %p58 = scmp.eq.s32.totalorder %s24, 1
      %p59 = por %p57, %p58
      %p61 = scmp.ne.s32.totalorder %s44, %s60
      %p62 = scmp.eq.s32.totalorder %s24, 0
      %p63 = por %p61, %p62
      %s65 = sadd.s32 %s64, 1
      %p68 = scmp.eq.s32.totalorder %s18, 1
      %p69 = scmp.ne.s32.totalorder %s64, %s66
      %p70 = scmp.eq.s32.totalorder %s18, 0
      %p71 = por %p69, %p70
      %p72 = scmp.ne.s32.totalorder %s64, %s66
      %p73 = scmp.eq.s32.totalorder %s23, 1
      %p74 = por %p72, %p73
      %p75 = scmp.ne.s32.totalorder %s66, %s67
      %p76 = scmp.eq.s32.totalorder %s23, 0
      %p77 = por %p75, %p76
      %p78 = scmp.ne.s32.totalorder %s66, %s67
      %p79 = scmp.eq.s32.totalorder %s24, 1
      %p80 = por %p78, %p79
      %p82 = scmp.ne.s32.totalorder %s67, %s81
      %p83 = scmp.eq.s32.totalorder %s24, 0
      %p84 = por %p82, %p83
      %s86 = sadd.s32 %s85, 1
      %p89 = scmp.eq.s32.totalorder %s18, 1
      %p90 = scmp.ne.s32.totalorder %s85, %s87
      %p91 = scmp.eq.s32.totalorder %s18, 0
      %p92 = por %p90, %p91
      %p93 = scmp.ne.s32.totalorder %s85, %s87
      %p94 = scmp.eq.s32.totalorder %s23, 1
      %p95 = por %p93, %p94
      %p96 = scmp.ne.s32.totalorder %s87, %s88
      %p97 = scmp.eq.s32.totalorder %s23, 0
      %p98 = por %p96, %p97
      %p99 = scmp.ne.s32.totalorder %s87, %s88
      %p100 = scmp.eq.s32.totalorder %s24, 1
      %p101 = por %p99, %p100
      %p103 = scmp.ne.s32.totalorder %s88, %s102
      %p104 = scmp.eq.s32.totalorder %s24, 0
      %p105 = por %p103, %p104
      %s107 = sadd.s32 %s106, 1
      %p110 = scmp.eq.s32.totalorder %s18, 1
      %p111 = scmp.ne.s32.totalorder %s106, %s108
      %p112 = scmp.eq.s32.totalorder %s18, 0
      %p113 = por %p111, %p112
      %p114 = scmp.ne.s32.totalorder %s106, %s108
      %p115 = scmp.eq.s32.totalorder %s23, 1
      %p116 = por %p114, %p115
      %p117 = scmp.ne.s32.totalorder %s108, %s109
      %p118 = scmp.eq.s32.totalorder %s23, 0
      %p119 = por %p117, %p118
      %p120 = scmp.ne.s32.totalorder %s108, %s109
      %p121 = scmp.eq.s32.totalorder %s24, 1
      %p122 = por %p120, %p121
      %p124 = scmp.ne.s32.totalorder %s109, %s123
      %p125 = scmp.eq.s32.totalorder %s24, 0
      %p126 = por %p124, %p125
      %s128 = sadd.s32 %s127, 1
      %p131 = scmp.eq.s32.totalorder %s18, 1
      %p132 = scmp.ne.s32.totalorder %s127, %s129
      %p133 = scmp.eq.s32.totalorder %s18, 0
      %p134 = por %p132, %p133
      %p135 = scmp.ne.s32.totalorder %s127, %s129
      %p136 = scmp.eq.s32.totalorder %s23, 1
      %p137 = por %p135, %p136
      %p138 = scmp.ne.s32.totalorder %s129, %s130
      %p139 = scmp.eq.s32.totalorder %s23, 0
      %p140 = por %p138, %p139
      %p141 = scmp.ne.s32.totalorder %s129, %s130
      %p142 = scmp.eq.s32.totalorder %s24, 1
      %p143 = por %p141, %p142
      %p145 = scmp.ne.s32.totalorder %s130, %s144
      %p146 = scmp.eq.s32.totalorder %s24, 0
      %p147 = por %p145, %p146
      %s148 = ssub.s32 %s25, %s37
      %s149 = ssub.s32 %s26, %s33
      %s150 = sor.u32 %s148, %s149
      %p151 = scmp.eq.s32.totalorder %s150, 0
      %s153 = sadd.s32 %s152, 1
      %s154 = scalar_select %p151, %s152, %s153
      %p157 = pneg %p151
      %p158 = scmp.eq.s32.totalorder %s18, 1
      %p159 = por %p157, %p158
      %p160 = scmp.ne.s32.totalorder %s152, %s155
      %p161 = scmp.eq.s32.totalorder %s18, 0
      %p162 = por %p160, %p161
      %p163 = scmp.ne.s32.totalorder %s152, %s155
      %p164 = scmp.eq.s32.totalorder %s23, 1
      %p165 = por %p163, %p164
      %p166 = scmp.ne.s32.totalorder %s155, %s156
      %p167 = scmp.eq.s32.totalorder %s23, 0
      %p168 = por %p166, %p167
      %p169 = scmp.ne.s32.totalorder %s155, %s156
      %p170 = scmp.eq.s32.totalorder %s24, 1
      %p171 = por %p169, %p170
      %p173 = scmp.ne.s32.totalorder %s156, %s172
      %p174 = scmp.eq.s32.totalorder %s24, 0
      %p175 = por %p173, %p174
      %p176 = scmp.le.s32.totalorder 1, %s18
      %p177 = scmp.lt.s32.totalorder %s18, 3
      %p178 = pnand %p176, %p177
      %p179 = pneg %p178
      // Predicated region
      $region9: #{tpu_custom_call.1} parent=5 // pred_check
        _
      $region10: #{tpu_custom_call.1} parent=5 // pred_check_branch
        %181 = sbr.rel (%p178) target = $region12
      $region11: #{tpu_custom_call.1} parent=5 // pred_region
        %s182 = ssub.s32 %s18, 1
        // Predicated region
        $region13: #{tpu_custom_call.1} parent=11 // pred_check
          %p183 = pneg %p77
        $region14: #{tpu_custom_call.1} parent=11 // pred_check_branch
          %185 = sbr.rel (%p183) target = $region16
        $region15: #{tpu_custom_call.1} parent=11 // pred_region
          %s187 = ssub.s32 512, 512
          %188 = vsyncadd [#allocation8], %s187
          %s189 = sshll.u32 [#allocation7], 4
          %s190 = int_to_ptr.vmem [resolvable:$true] %s189
          %195 = dma.hbm_to_vmem [thread:$0]  %s1, 512, %s190, [#allocation8], 128, 128, 8
        $region16: #{tpu_custom_call.1} parent=11 // pred_fallthru
          _
        // Predicated region
        $region17: #{tpu_custom_call.1} parent=11 // pred_check
          %p196 = pneg %p98
        $region18: #{tpu_custom_call.1} parent=11 // pred_check_branch
          %198 = sbr.rel (%p196) target = $region20
        $region19: #{tpu_custom_call.1} parent=11 // pred_region
          _
        $region20: #{tpu_custom_call.1} parent=11 // pred_fallthru
          _
        // Predicated region
        $region21: #{tpu_custom_call.1} parent=11 // pred_check
          %p199 = pneg %p119
        $region22: #{tpu_custom_call.1} parent=11 // pred_check_branch
          %201 = sbr.rel (%p199) target = $region24
        $region23: #{tpu_custom_call.1} parent=11 // pred_region
          %s203 = ssub.s32 512, 512
          %204 = vsyncadd [#allocation8], %s203
          %s205 = sshll.u32 [#allocation9], 4
          %s206 = int_to_ptr.vmem [resolvable:$true] %s205
          %211 = dma.hbm_to_vmem [thread:$0]  %s3, 512, %s206, [#allocation8], 128, 128, 8
        $region24: #{tpu_custom_call.1} parent=11 // pred_fallthru
          _
        // Predicated region
        $region25: #{tpu_custom_call.1} parent=11 // pred_check
          %p212 = pneg %p140
        $region26: #{tpu_custom_call.1} parent=11 // pred_check_branch
          %214 = sbr.rel (%p212) target = $region28
        $region27: #{tpu_custom_call.1} parent=11 // pred_region
          _
        $region28: #{tpu_custom_call.1} parent=11 // pred_fallthru
          _
      $region12: #{tpu_custom_call.1} parent=5 // pred_fallthru
        _
      %p215 = scmp.lt.s32.totalorder %s18, 2
      // Predicated region
      $region29: #{tpu_custom_call.1} parent=5 // pred_check
        %p216 = pneg %p215
      $region30: #{tpu_custom_call.1} parent=5 // pred_check_branch
        %218 = sbr.rel (%p216) target = $region32
      $region31: #{tpu_custom_call.1} parent=5 // pred_region
        // Predicated region
        $region33: #{tpu_custom_call.1} parent=31 // pred_check
          %p219 = pneg %p50
        $region34: #{tpu_custom_call.1} parent=31 // pred_check_branch
          %221 = sbr.rel (%p219) target = $region36
        $region35: #{tpu_custom_call.1} parent=31 // pred_region
          %s222 = sand.u32 %s40, 1
          %s223 = scalar_lea.sflag [#allocation5], %s222
          %s224 = sand.u32 %s40, 1
          %s225 = smul.addr %s224, 8
          %s226 = scalar_lea.vmem [#allocation4], %s225
          %s228 = ssub.s32 128, 128
          %229 = vsyncadd %s223, %s228
          %s230 = smul.addr %s25, 128
          %s231 = scalar_lea.hbm %s0, %s230
          %s233 = sshll.u32 %s226, 4
          %s234 = int_to_ptr.vmem [resolvable:$true] %s233
          %236 = dma.hbm_to_vmem [thread:$0]  %s231, 128, %s234, %s223
        $region36: #{tpu_custom_call.1} parent=31 // pred_fallthru
          _
      $region32: #{tpu_custom_call.1} parent=5 // pred_fallthru
        _
      %p237 = scmp.le.s32.totalorder 1, %s18
      %p238 = scmp.lt.s32.totalorder %s18, 3
      %p239 = pnand %p237, %p238
      %p240 = pneg %p239
      // Predicated region
      $region37: #{tpu_custom_call.1} parent=5 // pred_check
        _
      $region38: #{tpu_custom_call.1} parent=5 // pred_check_branch
        %242 = sbr.rel (%p239) target = $region40
      $region39: #{tpu_custom_call.1} parent=5 // pred_region
        %s243 = ssub.s32 %s18, 1
        %s244 = sand.u32 %s43, 1
        %s245 = scalar_lea.sflag [#allocation5], %s244
        %s246 = sand.u32 %s43, 1
        %s247 = smul.addr %s246, 8
        %s248 = scalar_lea.vmem [#allocation4], %s247
        // Predicated region
        $region41: #{tpu_custom_call.1} parent=39 // pred_check
          %p249 = pneg %p56
        $region42: #{tpu_custom_call.1} parent=39 // pred_check_branch
          %251 = sbr.rel (%p249) target = $region44
        $region43: #{tpu_custom_call.1} parent=39 // pred_region
          %252 = dma.done %s245, 128
        $region44: #{tpu_custom_call.1} parent=39 // pred_fallthru
          _
        // Predicated region
        $region45: #{tpu_custom_call.1} parent=39 // pred_check
          %p253 = pneg %p77
        $region46: #{tpu_custom_call.1} parent=39 // pred_check_branch
          %255 = sbr.rel (%p253) target = $region48
        $region47: #{tpu_custom_call.1} parent=39 // pred_region
          %256 = dma.done [#allocation8], 512
        $region48: #{tpu_custom_call.1} parent=39 // pred_fallthru
          _
        // Predicated region
        $region49: #{tpu_custom_call.1} parent=39 // pred_check
          %p257 = pneg %p119
        $region50: #{tpu_custom_call.1} parent=39 // pred_check_branch
          %259 = sbr.rel (%p257) target = $region52
        $region51: #{tpu_custom_call.1} parent=39 // pred_region
          %260 = dma.done [#allocation8], 512
        $region52: #{tpu_custom_call.1} parent=39 // pred_fallthru
          _
        %s261 = sand.u32 %s43, 1
        %s262 = scalar_lea.sflag [#allocation5], %s261
        %s263 = sand.u32 %s43, 1
        %s264 = smul.addr %s263, 8
        %s265 = scalar_lea.vmem [#allocation4], %s264
        %p266 = pneg %p56
        %p267 = pneg %p53
        %p268 = pneg %p77
        %p269 = pneg %p74
        %p270 = pneg %p98
        %p271 = pneg %p95
        %p272 = pneg %p119
        %p273 = pneg %p116
        %p274 = pneg %p140
        %p275 = pneg %p137
        %p276 = pneg %p168
        %p277 = pneg %p165
        %s278 = sand.u32 %s155, 1
        %s279 = scalar_lea.sflag [#allocation6], %s278
        %s280 = sand.u32 %s155, 1
        %s281 = smul.addr %s280, 8
        %s282 = scalar_lea.vmem [#allocation10], %s281
        %p283 = scmp.eq.s32.totalorder %s28, 0
        // Predicated region
        $region53: #{tpu_custom_call.1} parent=39 // pred_check
          %p284 = pneg %p283
        $region54: #{tpu_custom_call.1} parent=39 // pred_check_branch
          %286 = sbr.rel (%p284) target = $region56
        $region55: #{tpu_custom_call.1} parent=39 // pred_region
          %v287 = vld [vmem:[#allocation9] sm:$0xff]
          %v288 = vld [vmem:[#allocation9 + $0x8] sm:$0xff]
          %v289 = vld [vmem:[#allocation9 + $0x10] sm:$0xff]
          %v290 = vld [vmem:[#allocation9 + $0x18] sm:$0xff]
          %v291 = vld [vmem:[%s4] sm:$0x1]
          %v292 = vld [vmem:[%s248] sm:$0xff]
          %v294 = vlaneseq
          %v295 = vshrl.u32 %v294, 7
          %v296 = vsub.s32 0, %v295
          %v297 = vrot.slane %v291, %v296
          %vm299 = vcmask 261120
          %v301 = vsel %vm299, %v292, 0
          %303 = vmatprep.subr.mxu0 0.0
          %304 = vmatpush1.msra.mxu0 0.0
          %305 = vmatprep.subr.mxu0 0.0
          %306 = vmatpush1.msra.mxu0 0.0
          %307 = vmatprep.subr.mxu0 0.0
          %308 = vmatpush1.msra.mxu0 0.0
          %309 = vmatprep.subr.mxu0 0.0
          %310 = vmatpush1.msra.mxu0 0.0
          %311 = vmatprep.subr.mxu0 0.0
          %312 = vmatpush1.msra.mxu0 0.0
          %313 = vmatprep.subr.mxu0 0.0
          %314 = vmatpush1.msra.mxu0 0.0
          %315 = vmatprep.subr.mxu0 0.0
          %316 = vmatpush1.msra.mxu0 0.0
          %317 = vmatprep.subr.mxu0 0.0
          %318 = vmatpush1.msra.mxu0 0.0
          %319 = vmatprep.subr.mxu0 0.0
          %320 = vmatpush1.msra.mxu0 0.0
          %321 = vmatprep.subr.mxu0 0.0
          %322 = vmatpush1.msra.mxu0 0.0
          %323 = vmatprep.subr.mxu0 0.0
          %324 = vmatpush1.msra.mxu0 0.0
          %325 = vmatprep.subr.mxu0 0.0
          %326 = vmatpush1.msra.mxu0 0.0
          %327 = vmatprep.subr.mxu0 0.0
          %328 = vmatpush1.msra.mxu0 %v290
          %329 = vmatprep.subr.mxu0 0.0
          %330 = vmatpush1.msra.mxu0 %v289
          %331 = vmatprep.subr.mxu0 0.0
          %332 = vmatpush1.msra.mxu0 %v288
          %333 = vmatprep.subr.mxu0 0.0
          %334 = vmatpush1.msra.mxu0 %v287
          %335 = vmatprep.subr.mxu0 0.0
          %336 = vmatpush2.msra.mxu0 0.0
          %337 = vmatprep.subr.mxu0 0.0
          %338 = vmatpush2.msra.mxu0 0.0
          %339 = vmatprep.subr.mxu0 0.0
          %340 = vmatpush2.msra.mxu0 0.0
          %341 = vmatprep.subr.mxu0 0.0
          %342 = vmatpush2.msra.mxu0 0.0
          %343 = vmatprep.subr.mxu0 0.0
          %344 = vmatpush2.msra.mxu0 0.0
          %345 = vmatprep.subr.mxu0 0.0
          %346 = vmatpush2.msra.mxu0 0.0
          %347 = vmatprep.subr.mxu0 0.0
          %348 = vmatpush2.msra.mxu0 0.0
          %349 = vmatprep.subr.mxu0 0.0
          %350 = vmatpush2.msra.mxu0 0.0
          %351 = vmatprep.subr.mxu0 0.0
          %352 = vmatpush2.msra.mxu0 0.0
          %353 = vmatprep.subr.mxu0 0.0
          %354 = vmatpush2.msra.mxu0 0.0
          %355 = vmatprep.subr.mxu0 0.0
          %356 = vmatpush2.msra.mxu0 0.0
          %357 = vmatprep.subr.mxu0 0.0
          %358 = vmatpush2.msra.mxu0 0.0
          %359 = vmatprep.subr.mxu0 0.0
          %360 = vmatpush2.msra.mxu0 0.0
          %361 = vmatprep.subr.mxu0 0.0
          %362 = vmatpush2.msra.mxu0 0.0
          %363 = vmatprep.subr.mxu0 0.0
          %364 = vmatpush2.msra.mxu0 0.0
          %365 = vmatprep.subr.mxu0 0.0
          %366 = vmatpush2.msra.mxu0 0.0
          %367 = vmatprep.mubr.f32.mxu0 0.0
          %368 = vmatmul.mubr.f32.gmra.mxu0 %v301
          %v369 = vpop.f32.mrf.mxu0
          %v370 = vadd.f32 %v297, %v369
          %v371 = vpop.f32.mrf.mxu0
          %372 = vdwg.mxu0
          %vm373 = vcmask 523264
          %374 = vst.msk [vmem:[#allocation2] sm:$0xff] %vm373, %v370
        $region56: #{tpu_custom_call.1} parent=39 // pred_fallthru
          _
        %s375 = smul.u32 %s28, 8
        %s376 = scalar_lea.vmem %s248, %s375 [#allocation4]
        %v377 = vld [vmem:[%s376] sm:$0xff]
        %v378 = vld [vmem:[#allocation7] sm:$0xff]
        %v379 = vld [vmem:[#allocation7 + $0x8] sm:$0xff]
        %v380 = vld [vmem:[#allocation7 + $0x10] sm:$0xff]
        %v381 = vld [vmem:[#allocation7 + $0x18] sm:$0xff]
        %v382 = vld [vmem:[%s2] sm:$0x1]
        %v384 = vlaneseq
        %v385 = vshrl.u32 %v384, 7
        %v386 = vsub.s32 0, %v385
        %v387 = vrot.slane %v382, %v386
        %vm389 = vcmask 261120
        %v391 = vsel %vm389, %v377, 0
        %393 = vmatprep.subr.mxu0 0.0
        %394 = vmatpush1.msra.mxu0 0.0
        %395 = vmatprep.subr.mxu0 0.0
        %396 = vmatpush1.msra.mxu0 0.0
        %397 = vmatprep.subr.mxu0 0.0
        %398 = vmatpush1.msra.mxu0 0.0
        %399 = vmatprep.subr.mxu0 0.0
        %400 = vmatpush1.msra.mxu0 0.0
        %401 = vmatprep.subr.mxu0 0.0
        %402 = vmatpush1.msra.mxu0 0.0
        %403 = vmatprep.subr.mxu0 0.0
        %404 = vmatpush1.msra.mxu0 0.0
        %405 = vmatprep.subr.mxu0 0.0
        %406 = vmatpush1.msra.mxu0 0.0
        %407 = vmatprep.subr.mxu0 0.0
        %408 = vmatpush1.msra.mxu0 0.0
        %409 = vmatprep.subr.mxu0 0.0
        %410 = vmatpush1.msra.mxu0 0.0
        %411 = vmatprep.subr.mxu0 0.0
        %412 = vmatpush1.msra.mxu0 0.0
        %413 = vmatprep.subr.mxu0 0.0
        %414 = vmatpush1.msra.mxu0 0.0
        %415 = vmatprep.subr.mxu0 0.0
        %416 = vmatpush1.msra.mxu0 0.0
        %417 = vmatprep.subr.mxu0 0.0
        %418 = vmatpush1.msra.mxu0 %v381
        %419 = vmatprep.subr.mxu0 0.0
        %420 = vmatpush1.msra.mxu0 %v380
        %421 = vmatprep.subr.mxu0 0.0
        %422 = vmatpush1.msra.mxu0 %v379
        %423 = vmatprep.subr.mxu0 0.0
        %424 = vmatpush1.msra.mxu0 %v378
        %425 = vmatprep.subr.mxu0 0.0
        %426 = vmatpush2.msra.mxu0 0.0
        %427 = vmatprep.subr.mxu0 0.0
        %428 = vmatpush2.msra.mxu0 0.0
        %429 = vmatprep.subr.mxu0 0.0
        %430 = vmatpush2.msra.mxu0 0.0
        %431 = vmatprep.subr.mxu0 0.0
        %432 = vmatpush2.msra.mxu0 0.0
        %433 = vmatprep.subr.mxu0 0.0
        %434 = vmatpush2.msra.mxu0 0.0
        %435 = vmatprep.subr.mxu0 0.0
        %436 = vmatpush2.msra.mxu0 0.0
        %437 = vmatprep.subr.mxu0 0.0
        %438 = vmatpush2.msra.mxu0 0.0
        %439 = vmatprep.subr.mxu0 0.0
        %440 = vmatpush2.msra.mxu0 0.0
        %441 = vmatprep.subr.mxu0 0.0
        %442 = vmatpush2.msra.mxu0 0.0
        %443 = vmatprep.subr.mxu0 0.0
        %444 = vmatpush2.msra.mxu0 0.0
        %445 = vmatprep.subr.mxu0 0.0
        %446 = vmatpush2.msra.mxu0 0.0
        %447 = vmatprep.subr.mxu0 0.0
        %448 = vmatpush2.msra.mxu0 0.0
        %449 = vmatprep.subr.mxu0 0.0
        %450 = vmatpush2.msra.mxu0 0.0
        %451 = vmatprep.subr.mxu0 0.0
        %452 = vmatpush2.msra.mxu0 0.0
        %453 = vmatprep.subr.mxu0 0.0
        %454 = vmatpush2.msra.mxu0 0.0
        %455 = vmatprep.subr.mxu0 0.0
        %456 = vmatpush2.msra.mxu0 0.0
        %457 = vmatprep.mubr.f32.mxu0 0.0
        %458 = vmatmul.mubr.f32.gmra.mxu0 %v391
        %v459 = vpop.f32.mrf.mxu0
        %v460 = vadd.f32 %v387, %v459
        %v461 = vpop.f32.mrf.mxu0
        %462 = vdwg.mxu0
        %v463 = vld [vmem:[#allocation2] sm:$0xff]
        %vm464 = vcmask 64512
        %v466 = vsel %vm464, %v460, 0
        %v469 = vsel %vm464, %v463, 0
        %471 = vmatprep.subr.mxu0 0.0
        %472 = vmatpush1.xpose.msra.mxu0 0.0
        %473 = vmatprep.subr.mxu0 0.0
        %474 = vmatpush1.xpose.msra.mxu0 0.0
        %475 = vmatprep.subr.mxu0 0.0
        %476 = vmatpush1.xpose.msra.mxu0 0.0
        %477 = vmatprep.subr.mxu0 0.0
        %478 = vmatpush1.xpose.msra.mxu0 0.0
        %479 = vmatprep.subr.mxu0 0.0
        %480 = vmatpush1.xpose.msra.mxu0 0.0
        %481 = vmatprep.subr.mxu0 0.0
        %482 = vmatpush1.xpose.msra.mxu0 0.0
        %483 = vmatprep.subr.mxu0 0.0
        %484 = vmatpush1.xpose.msra.mxu0 0.0
        %485 = vmatprep.subr.mxu0 0.0
        %486 = vmatpush1.xpose.msra.mxu0 0.0
        %487 = vmatprep.subr.mxu0 0.0
        %488 = vmatpush1.xpose.msra.mxu0 0.0
        %489 = vmatprep.subr.mxu0 0.0
        %490 = vmatpush1.xpose.msra.mxu0 0.0
        %491 = vmatprep.subr.mxu0 0.0
        %492 = vmatpush1.xpose.msra.mxu0 0.0
        %493 = vmatprep.subr.mxu0 0.0
        %494 = vmatpush1.xpose.msra.mxu0 0.0
        %495 = vmatprep.subr.mxu0 0.0
        %496 = vmatpush1.xpose.msra.mxu0 0.0
        %497 = vmatprep.subr.mxu0 0.0
        %498 = vmatpush1.xpose.msra.mxu0 0.0
        %499 = vmatprep.subr.mxu0 0.0
        %500 = vmatpush1.xpose.msra.mxu0 0.0
        %501 = vmatprep.subr.mxu0 0.0
        %502 = vmatpush1.xpose.msra.mxu0 %v469
        %503 = vmatprep.subr.mxu0 0.0
        %504 = vmatpush2.xpose.msra.mxu0 0.0
        %505 = vmatprep.subr.mxu0 0.0
        %506 = vmatpush2.xpose.msra.mxu0 0.0
        %507 = vmatprep.subr.mxu0 0.0
        %508 = vmatpush2.xpose.msra.mxu0 0.0
        %509 = vmatprep.subr.mxu0 0.0
        %510 = vmatpush2.xpose.msra.mxu0 0.0
        %511 = vmatprep.subr.mxu0 0.0
        %512 = vmatpush2.xpose.msra.mxu0 0.0
        %513 = vmatprep.subr.mxu0 0.0
        %514 = vmatpush2.xpose.msra.mxu0 0.0
        %515 = vmatprep.subr.mxu0 0.0
        %516 = vmatpush2.xpose.msra.mxu0 0.0
        %517 = vmatprep.subr.mxu0 0.0
        %518 = vmatpush2.xpose.msra.mxu0 0.0
        %519 = vmatprep.subr.mxu0 0.0
        %520 = vmatpush2.xpose.msra.mxu0 0.0
        %521 = vmatprep.subr.mxu0 0.0
        %522 = vmatpush2.xpose.msra.mxu0 0.0
        %523 = vmatprep.subr.mxu0 0.0
        %524 = vmatpush2.xpose.msra.mxu0 0.0
        %525 = vmatprep.subr.mxu0 0.0
        %526 = vmatpush2.xpose.msra.mxu0 0.0
        %527 = vmatprep.subr.mxu0 0.0
        %528 = vmatpush2.xpose.msra.mxu0 0.0
        %529 = vmatprep.subr.mxu0 0.0
        %530 = vmatpush2.xpose.msra.mxu0 0.0
        %531 = vmatprep.subr.mxu0 0.0
        %532 = vmatpush2.xpose.msra.mxu0 0.0
        %533 = vmatprep.subr.mxu0 0.0
        %534 = vmatpush2.xpose.msra.mxu0 0.0
        %535 = vmatprep.mubr.f32.mxu0 0.0
        %536 = vmatmul.mubr.f32.gmra.mxu0 %v466
        %v537 = vpop.f32.mrf.mxu0
        %v538 = vadd.f32 0.0, %v537
        %v539 = vpop.f32.mrf.mxu0
        %540 = vdwg.mxu0
        %v541 = vsel %vm464, %v538, -inf
        %542 = vmax.xlane.f32.xlu0 %v541
        %v543 = vpop.xlane.xlu0 %542
        %v544 = vsub.f32 %v538, %v543
        %v545 = vmul.f32 %v544, 1.442695
        %v546 = vpow.pop %v545
        %v547 = vsel %vm464, %v546, 0.0
        %548 = vadd.xlane.f32.xlu0 %v547
        %v549 = vpop.xlane.xlu0 %548
        %550 = vrot.lane.b32.xlu0 %v463, 96
        %v551 = vpop.permute.xlu0 %550
        %v554 = vsel %vm464, %v546, 0
        %556 = vmatprep.subr.mxu0 0.0
        %557 = vmatpush1.msra.mxu0 0.0
        %558 = vmatprep.subr.mxu0 0.0
        %559 = vmatpush1.msra.mxu0 0.0
        %560 = vmatprep.subr.mxu0 0.0
        %561 = vmatpush1.msra.mxu0 0.0
        %562 = vmatprep.subr.mxu0 0.0
        %563 = vmatpush1.msra.mxu0 0.0
        %564 = vmatprep.subr.mxu0 0.0
        %565 = vmatpush1.msra.mxu0 0.0
        %566 = vmatprep.subr.mxu0 0.0
        %567 = vmatpush1.msra.mxu0 0.0
        %568 = vmatprep.subr.mxu0 0.0
        %569 = vmatpush1.msra.mxu0 0.0
        %570 = vmatprep.subr.mxu0 0.0
        %571 = vmatpush1.msra.mxu0 0.0
        %572 = vmatprep.subr.mxu0 0.0
        %573 = vmatpush1.msra.mxu0 0.0
        %574 = vmatprep.subr.mxu0 0.0
        %575 = vmatpush1.msra.mxu0 0.0
        %576 = vmatprep.subr.mxu0 0.0
        %577 = vmatpush1.msra.mxu0 0.0
        %578 = vmatprep.subr.mxu0 0.0
        %579 = vmatpush1.msra.mxu0 0.0
        %580 = vmatprep.subr.mxu0 0.0
        %581 = vmatpush1.msra.mxu0 0.0
        %582 = vmatprep.subr.mxu0 0.0
        %583 = vmatpush1.msra.mxu0 0.0
        %584 = vmatprep.subr.mxu0 0.0
        %585 = vmatpush1.msra.mxu0 0.0
        %586 = vmatprep.subr.mxu0 0.0
        %587 = vmatpush1.msra.mxu0 %v551
        %588 = vmatprep.subr.mxu0 0.0
        %589 = vmatpush2.msra.mxu0 0.0
        %590 = vmatprep.subr.mxu0 0.0
        %591 = vmatpush2.msra.mxu0 0.0
        %592 = vmatprep.subr.mxu0 0.0
        %593 = vmatpush2.msra.mxu0 0.0
        %594 = vmatprep.subr.mxu0 0.0
        %595 = vmatpush2.msra.mxu0 0.0
        %596 = vmatprep.subr.mxu0 0.0
        %597 = vmatpush2.msra.mxu0 0.0
        %598 = vmatprep.subr.mxu0 0.0
        %599 = vmatpush2.msra.mxu0 0.0
        %600 = vmatprep.subr.mxu0 0.0
        %601 = vmatpush2.msra.mxu0 0.0
        %602 = vmatprep.subr.mxu0 0.0
        %603 = vmatpush2.msra.mxu0 0.0
        %604 = vmatprep.subr.mxu0 0.0
        %605 = vmatpush2.msra.mxu0 0.0
        %606 = vmatprep.subr.mxu0 0.0
        %607 = vmatpush2.msra.mxu0 0.0
        %608 = vmatprep.subr.mxu0 0.0
        %609 = vmatpush2.msra.mxu0 0.0
        %610 = vmatprep.subr.mxu0 0.0
        %611 = vmatpush2.msra.mxu0 0.0
        %612 = vmatprep.subr.mxu0 0.0
        %613 = vmatpush2.msra.mxu0 0.0
        %614 = vmatprep.subr.mxu0 0.0
        %615 = vmatpush2.msra.mxu0 0.0
        %616 = vmatprep.subr.mxu0 0.0
        %617 = vmatpush2.msra.mxu0 0.0
        %618 = vmatprep.subr.mxu0 0.0
        %619 = vmatpush2.msra.mxu0 0.0
        %620 = vmatprep.mubr.f32.mxu0 0.0
        %621 = vmatmul.mubr.f32.gmra.mxu0 %v554
        %v622 = vpop.f32.mrf.mxu0
        %v623 = vadd.f32 0.0, %v622
        %v624 = vpop.f32.mrf.mxu0
        %625 = vdwg.mxu0
        %v626 = vrcp.pop %v549
        %v627 = vmul.f32 %v623, %v626
        %628 = vst.msk [vmem:[#allocation3] sm:$0xff] %vm464, %v627
        %v629 = vld [vmem:[#allocation2] sm:$0xff]
        %630 = vrot.lane.b32.xlu0 %v460, 120
        %v631 = vpop.permute.xlu0 %630
        %633 = vrot.lane.b32.xlu0 %v629, 120
        %v634 = vpop.permute.xlu0 %633
        %v635 = vsel %vm464, %v631, 0
        %v637 = vsel %vm464, %v634, 0
        %639 = vmatprep.subr.mxu0 0.0
        %640 = vmatpush1.xpose.msra.mxu0 0.0
        %641 = vmatprep.subr.mxu0 0.0
        %642 = vmatpush1.xpose.msra.mxu0 0.0
        %643 = vmatprep.subr.mxu0 0.0
        %644 = vmatpush1.xpose.msra.mxu0 0.0
        %645 = vmatprep.subr.mxu0 0.0
        %646 = vmatpush1.xpose.msra.mxu0 0.0
        %647 = vmatprep.subr.mxu0 0.0
        %648 = vmatpush1.xpose.msra.mxu0 0.0
        %649 = vmatprep.subr.mxu0 0.0
        %650 = vmatpush1.xpose.msra.mxu0 0.0
        %651 = vmatprep.subr.mxu0 0.0
        %652 = vmatpush1.xpose.msra.mxu0 0.0
        %653 = vmatprep.subr.mxu0 0.0
        %654 = vmatpush1.xpose.msra.mxu0 0.0
        %655 = vmatprep.subr.mxu0 0.0
        %656 = vmatpush1.xpose.msra.mxu0 0.0
        %657 = vmatprep.subr.mxu0 0.0
        %658 = vmatpush1.xpose.msra.mxu0 0.0
        %659 = vmatprep.subr.mxu0 0.0
        %660 = vmatpush1.xpose.msra.mxu0 0.0
        %661 = vmatprep.subr.mxu0 0.0
        %662 = vmatpush1.xpose.msra.mxu0 0.0
        %663 = vmatprep.subr.mxu0 0.0
        %664 = vmatpush1.xpose.msra.mxu0 0.0
        %665 = vmatprep.subr.mxu0 0.0
        %666 = vmatpush1.xpose.msra.mxu0 0.0
        %667 = vmatprep.subr.mxu0 0.0
        %668 = vmatpush1.xpose.msra.mxu0 0.0
        %669 = vmatprep.subr.mxu0 0.0
        %670 = vmatpush1.xpose.msra.mxu0 %v637
        %671 = vmatprep.subr.mxu0 0.0
        %672 = vmatpush2.xpose.msra.mxu0 0.0
        %673 = vmatprep.subr.mxu0 0.0
        %674 = vmatpush2.xpose.msra.mxu0 0.0
        %675 = vmatprep.subr.mxu0 0.0
        %676 = vmatpush2.xpose.msra.mxu0 0.0
        %677 = vmatprep.subr.mxu0 0.0
        %678 = vmatpush2.xpose.msra.mxu0 0.0
        %679 = vmatprep.subr.mxu0 0.0
        %680 = vmatpush2.xpose.msra.mxu0 0.0
        %681 = vmatprep.subr.mxu0 0.0
        %682 = vmatpush2.xpose.msra.mxu0 0.0
        %683 = vmatprep.subr.mxu0 0.0
        %684 = vmatpush2.xpose.msra.mxu0 0.0
        %685 = vmatprep.subr.mxu0 0.0
        %686 = vmatpush2.xpose.msra.mxu0 0.0
        %687 = vmatprep.subr.mxu0 0.0
        %688 = vmatpush2.xpose.msra.mxu0 0.0
        %689 = vmatprep.subr.mxu0 0.0
        %690 = vmatpush2.xpose.msra.mxu0 0.0
        %691 = vmatprep.subr.mxu0 0.0
        %692 = vmatpush2.xpose.msra.mxu0 0.0
        %693 = vmatprep.subr.mxu0 0.0
        %694 = vmatpush2.xpose.msra.mxu0 0.0
        %695 = vmatprep.subr.mxu0 0.0
        %696 = vmatpush2.xpose.msra.mxu0 0.0
        %697 = vmatprep.subr.mxu0 0.0
        %698 = vmatpush2.xpose.msra.mxu0 0.0
        %699 = vmatprep.subr.mxu0 0.0
        %700 = vmatpush2.xpose.msra.mxu0 0.0
        %701 = vmatprep.subr.mxu0 0.0
        %702 = vmatpush2.xpose.msra.mxu0 0.0
        %703 = vmatprep.mubr.f32.mxu0 0.0
        %704 = vmatmul.mubr.f32.gmra.mxu0 %v635
        %v705 = vpop.f32.mrf.mxu0
        %v706 = vadd.f32 0.0, %v705
        %v707 = vpop.f32.mrf.mxu0
        %708 = vdwg.mxu0
        %v709 = vsel %vm464, %v706, -inf
        %710 = vmax.xlane.f32.xlu0 %v709
        %v711 = vpop.xlane.xlu0 %710
        %v712 = vsub.f32 %v706, %v711
        %v713 = vmul.f32 %v712, 1.442695
        %v714 = vpow.pop %v713
        %v715 = vsel %vm464, %v714, 0.0
        %716 = vadd.xlane.f32.xlu0 %v715
        %v717 = vpop.xlane.xlu0 %716
        %718 = vrot.lane.b32.xlu0 %v629, 88
        %v719 = vpop.permute.xlu0 %718
        %v722 = vsel %vm464, %v714, 0
        %724 = vmatprep.subr.mxu0 0.0
        %725 = vmatpush1.msra.mxu0 0.0
        %726 = vmatprep.subr.mxu0 0.0
        %727 = vmatpush1.msra.mxu0 0.0
        %728 = vmatprep.subr.mxu0 0.0
        %729 = vmatpush1.msra.mxu0 0.0
        %730 = vmatprep.subr.mxu0 0.0
        %731 = vmatpush1.msra.mxu0 0.0
        %732 = vmatprep.subr.mxu0 0.0
        %733 = vmatpush1.msra.mxu0 0.0
        %734 = vmatprep.subr.mxu0 0.0
        %735 = vmatpush1.msra.mxu0 0.0
        %736 = vmatprep.subr.mxu0 0.0
        %737 = vmatpush1.msra.mxu0 0.0
        %738 = vmatprep.subr.mxu0 0.0
        %739 = vmatpush1.msra.mxu0 0.0
        %740 = vmatprep.subr.mxu0 0.0
        %741 = vmatpush1.msra.mxu0 0.0
        %742 = vmatprep.subr.mxu0 0.0
        %743 = vmatpush1.msra.mxu0 0.0
        %744 = vmatprep.subr.mxu0 0.0
        %745 = vmatpush1.msra.mxu0 0.0
        %746 = vmatprep.subr.mxu0 0.0
        %747 = vmatpush1.msra.mxu0 0.0
        %748 = vmatprep.subr.mxu0 0.0
        %749 = vmatpush1.msra.mxu0 0.0
        %750 = vmatprep.subr.mxu0 0.0
        %751 = vmatpush1.msra.mxu0 0.0
        %752 = vmatprep.subr.mxu0 0.0
        %753 = vmatpush1.msra.mxu0 0.0
        %754 = vmatprep.subr.mxu0 0.0
        %755 = vmatpush1.msra.mxu0 %v719
        %756 = vmatprep.subr.mxu0 0.0
        %757 = vmatpush2.msra.mxu0 0.0
        %758 = vmatprep.subr.mxu0 0.0
        %759 = vmatpush2.msra.mxu0 0.0
        %760 = vmatprep.subr.mxu0 0.0
        %761 = vmatpush2.msra.mxu0 0.0
        %762 = vmatprep.subr.mxu0 0.0
        %763 = vmatpush2.msra.mxu0 0.0
        %764 = vmatprep.subr.mxu0 0.0
        %765 = vmatpush2.msra.mxu0 0.0
        %766 = vmatprep.subr.mxu0 0.0
        %767 = vmatpush2.msra.mxu0 0.0
        %768 = vmatprep.subr.mxu0 0.0
        %769 = vmatpush2.msra.mxu0 0.0
        %770 = vmatprep.subr.mxu0 0.0
        %771 = vmatpush2.msra.mxu0 0.0
        %772 = vmatprep.subr.mxu0 0.0
        %773 = vmatpush2.msra.mxu0 0.0
        %774 = vmatprep.subr.mxu0 0.0
        %775 = vmatpush2.msra.mxu0 0.0
        %776 = vmatprep.subr.mxu0 0.0
        %777 = vmatpush2.msra.mxu0 0.0
        %778 = vmatprep.subr.mxu0 0.0
        %779 = vmatpush2.msra.mxu0 0.0
        %780 = vmatprep.subr.mxu0 0.0
        %781 = vmatpush2.msra.mxu0 0.0
        %782 = vmatprep.subr.mxu0 0.0
        %783 = vmatpush2.msra.mxu0 0.0
        %784 = vmatprep.subr.mxu0 0.0
        %785 = vmatpush2.msra.mxu0 0.0
        %786 = vmatprep.subr.mxu0 0.0
        %787 = vmatpush2.msra.mxu0 0.0
        %788 = vmatprep.mubr.f32.mxu0 0.0
        %789 = vmatmul.mubr.f32.gmra.mxu0 %v722
        %v790 = vpop.f32.mrf.mxu0
        %v791 = vadd.f32 0.0, %v790
        %v792 = vpop.f32.mrf.mxu0
        %793 = vdwg.mxu0
        %v794 = vrcp.pop %v717
        %v795 = vmul.f32 %v791, %v794
        %797 = vrot.lane.b32.xlu0 %v795, 8
        %v798 = vpop.permute.xlu0 %797
        %vm800 = vcmask 130112
        %801 = vst.msk [vmem:[#allocation3] sm:$0xff] %vm800, %v798
        %v802 = vld [vmem:[#allocation2] sm:$0xff]
        %803 = vrot.lane.b32.xlu0 %v460, 112
        %v804 = vpop.permute.xlu0 %803
        %806 = vrot.lane.b32.xlu0 %v802, 112
        %v807 = vpop.permute.xlu0 %806
        %v808 = vsel %vm464, %v804, 0
        %v810 = vsel %vm464, %v807, 0
        %812 = vmatprep.subr.mxu0 0.0
        %813 = vmatpush1.xpose.msra.mxu0 0.0
        %814 = vmatprep.subr.mxu0 0.0
        %815 = vmatpush1.xpose.msra.mxu0 0.0
        %816 = vmatprep.subr.mxu0 0.0
        %817 = vmatpush1.xpose.msra.mxu0 0.0
        %818 = vmatprep.subr.mxu0 0.0
        %819 = vmatpush1.xpose.msra.mxu0 0.0
        %820 = vmatprep.subr.mxu0 0.0
        %821 = vmatpush1.xpose.msra.mxu0 0.0
        %822 = vmatprep.subr.mxu0 0.0
        %823 = vmatpush1.xpose.msra.mxu0 0.0
        %824 = vmatprep.subr.mxu0 0.0
        %825 = vmatpush1.xpose.msra.mxu0 0.0
        %826 = vmatprep.subr.mxu0 0.0
        %827 = vmatpush1.xpose.msra.mxu0 0.0
        %828 = vmatprep.subr.mxu0 0.0
        %829 = vmatpush1.xpose.msra.mxu0 0.0
        %830 = vmatprep.subr.mxu0 0.0
        %831 = vmatpush1.xpose.msra.mxu0 0.0
        %832 = vmatprep.subr.mxu0 0.0
        %833 = vmatpush1.xpose.msra.mxu0 0.0
        %834 = vmatprep.subr.mxu0 0.0
        %835 = vmatpush1.xpose.msra.mxu0 0.0
        %836 = vmatprep.subr.mxu0 0.0
        %837 = vmatpush1.xpose.msra.mxu0 0.0
        %838 = vmatprep.subr.mxu0 0.0
        %839 = vmatpush1.xpose.msra.mxu0 0.0
        %840 = vmatprep.subr.mxu0 0.0
        %841 = vmatpush1.xpose.msra.mxu0 0.0
        %842 = vmatprep.subr.mxu0 0.0
        %843 = vmatpush1.xpose.msra.mxu0 %v810
        %844 = vmatprep.subr.mxu0 0.0
        %845 = vmatpush2.xpose.msra.mxu0 0.0
        %846 = vmatprep.subr.mxu0 0.0
        %847 = vmatpush2.xpose.msra.mxu0 0.0
        %848 = vmatprep.subr.mxu0 0.0
        %849 = vmatpush2.xpose.msra.mxu0 0.0
        %850 = vmatprep.subr.mxu0 0.0
        %851 = vmatpush2.xpose.msra.mxu0 0.0
        %852 = vmatprep.subr.mxu0 0.0
        %853 = vmatpush2.xpose.msra.mxu0 0.0
        %854 = vmatprep.subr.mxu0 0.0
        %855 = vmatpush2.xpose.msra.mxu0 0.0
        %856 = vmatprep.subr.mxu0 0.0
        %857 = vmatpush2.xpose.msra.mxu0 0.0
        %858 = vmatprep.subr.mxu0 0.0
        %859 = vmatpush2.xpose.msra.mxu0 0.0
        %860 = vmatprep.subr.mxu0 0.0
        %861 = vmatpush2.xpose.msra.mxu0 0.0
        %862 = vmatprep.subr.mxu0 0.0
        %863 = vmatpush2.xpose.msra.mxu0 0.0
        %864 = vmatprep.subr.mxu0 0.0
        %865 = vmatpush2.xpose.msra.mxu0 0.0
        %866 = vmatprep.subr.mxu0 0.0
        %867 = vmatpush2.xpose.msra.mxu0 0.0
        %868 = vmatprep.subr.mxu0 0.0
        %869 = vmatpush2.xpose.msra.mxu0 0.0
        %870 = vmatprep.subr.mxu0 0.0
        %871 = vmatpush2.xpose.msra.mxu0 0.0
        %872 = vmatprep.subr.mxu0 0.0
        %873 = vmatpush2.xpose.msra.mxu0 0.0
        %874 = vmatprep.subr.mxu0 0.0
        %875 = vmatpush2.xpose.msra.mxu0 0.0
        %876 = vmatprep.mubr.f32.mxu0 0.0
        %877 = vmatmul.mubr.f32.gmra.mxu0 %v808
        %v878 = vpop.f32.mrf.mxu0
        %v879 = vadd.f32 0.0, %v878
        %v880 = vpop.f32.mrf.mxu0
        %881 = vdwg.mxu0
        %v882 = vsel %vm464, %v879, -inf
        %883 = vmax.xlane.f32.xlu0 %v882
        %v884 = vpop.xlane.xlu0 %883
        %v885 = vsub.f32 %v879, %v884
        %v886 = vmul.f32 %v885, 1.442695
        %v887 = vpow.pop %v886
        %v888 = vsel %vm464, %v887, 0.0
        %889 = vadd.xlane.f32.xlu0 %v888
        %v890 = vpop.xlane.xlu0 %889
        %891 = vrot.lane.b32.xlu0 %v802, 80
        %v892 = vpop.permute.xlu0 %891
        %v895 = vsel %vm464, %v887, 0
        %897 = vmatprep.subr.mxu0 0.0
        %898 = vmatpush1.msra.mxu0 0.0
        %899 = vmatprep.subr.mxu0 0.0
        %900 = vmatpush1.msra.mxu0 0.0
        %901 = vmatprep.subr.mxu0 0.0
        %902 = vmatpush1.msra.mxu0 0.0
        %903 = vmatprep.subr.mxu0 0.0
        %904 = vmatpush1.msra.mxu0 0.0
        %905 = vmatprep.subr.mxu0 0.0
        %906 = vmatpush1.msra.mxu0 0.0
        %907 = vmatprep.subr.mxu0 0.0
        %908 = vmatpush1.msra.mxu0 0.0
        %909 = vmatprep.subr.mxu0 0.0
        %910 = vmatpush1.msra.mxu0 0.0
        %911 = vmatprep.subr.mxu0 0.0
        %912 = vmatpush1.msra.mxu0 0.0
        %913 = vmatprep.subr.mxu0 0.0
        %914 = vmatpush1.msra.mxu0 0.0
        %915 = vmatprep.subr.mxu0 0.0
        %916 = vmatpush1.msra.mxu0 0.0
        %917 = vmatprep.subr.mxu0 0.0
        %918 = vmatpush1.msra.mxu0 0.0
        %919 = vmatprep.subr.mxu0 0.0
        %920 = vmatpush1.msra.mxu0 0.0
        %921 = vmatprep.subr.mxu0 0.0
        %922 = vmatpush1.msra.mxu0 0.0
        %923 = vmatprep.subr.mxu0 0.0
        %924 = vmatpush1.msra.mxu0 0.0
        %925 = vmatprep.subr.mxu0 0.0
        %926 = vmatpush1.msra.mxu0 0.0
        %927 = vmatprep.subr.mxu0 0.0
        %928 = vmatpush1.msra.mxu0 %v892
        %929 = vmatprep.subr.mxu0 0.0
        %930 = vmatpush2.msra.mxu0 0.0
        %931 = vmatprep.subr.mxu0 0.0
        %932 = vmatpush2.msra.mxu0 0.0
        %933 = vmatprep.subr.mxu0 0.0
        %934 = vmatpush2.msra.mxu0 0.0
        %935 = vmatprep.subr.mxu0 0.0
        %936 = vmatpush2.msra.mxu0 0.0
        %937 = vmatprep.subr.mxu0 0.0
        %938 = vmatpush2.msra.mxu0 0.0
        %939 = vmatprep.subr.mxu0 0.0
        %940 = vmatpush2.msra.mxu0 0.0
        %941 = vmatprep.subr.mxu0 0.0
        %942 = vmatpush2.msra.mxu0 0.0
        %943 = vmatprep.subr.mxu0 0.0
        %944 = vmatpush2.msra.mxu0 0.0
        %945 = vmatprep.subr.mxu0 0.0
        %946 = vmatpush2.msra.mxu0 0.0
        %947 = vmatprep.subr.mxu0 0.0
        %948 = vmatpush2.msra.mxu0 0.0
        %949 = vmatprep.subr.mxu0 0.0
        %950 = vmatpush2.msra.mxu0 0.0
        %951 = vmatprep.subr.mxu0 0.0
        %952 = vmatpush2.msra.mxu0 0.0
        %953 = vmatprep.subr.mxu0 0.0
        %954 = vmatpush2.msra.mxu0 0.0
        %955 = vmatprep.subr.mxu0 0.0
        %956 = vmatpush2.msra.mxu0 0.0
        %957 = vmatprep.subr.mxu0 0.0
        %958 = vmatpush2.msra.mxu0 0.0
        %959 = vmatprep.subr.mxu0 0.0
        %960 = vmatpush2.msra.mxu0 0.0
        %961 = vmatprep.mubr.f32.mxu0 0.0
        %962 = vmatmul.mubr.f32.gmra.mxu0 %v895
        %v963 = vpop.f32.mrf.mxu0
        %v964 = vadd.f32 0.0, %v963
        %v965 = vpop.f32.mrf.mxu0
        %966 = vdwg.mxu0
        %v967 = vrcp.pop %v890
        %v968 = vmul.f32 %v964, %v967
        %970 = vrot.lane.b32.xlu0 %v968, 16
        %v971 = vpop.permute.xlu0 %970
        %vm973 = vcmask 195712
        %974 = vst.msk [vmem:[#allocation3] sm:$0xff] %vm973, %v971
        %v975 = vld [vmem:[#allocation2] sm:$0xff]
        %976 = vrot.lane.b32.xlu0 %v460, 104
        %v977 = vpop.permute.xlu0 %976
        %979 = vrot.lane.b32.xlu0 %v975, 104
        %v980 = vpop.permute.xlu0 %979
        %v981 = vsel %vm464, %v977, 0
        %v983 = vsel %vm464, %v980, 0
        %985 = vmatprep.subr.mxu0 0.0
        %986 = vmatpush1.xpose.msra.mxu0 0.0
        %987 = vmatprep.subr.mxu0 0.0
        %988 = vmatpush1.xpose.msra.mxu0 0.0
        %989 = vmatprep.subr.mxu0 0.0
        %990 = vmatpush1.xpose.msra.mxu0 0.0
        %991 = vmatprep.subr.mxu0 0.0
        %992 = vmatpush1.xpose.msra.mxu0 0.0
        %993 = vmatprep.subr.mxu0 0.0
        %994 = vmatpush1.xpose.msra.mxu0 0.0
        %995 = vmatprep.subr.mxu0 0.0
        %996 = vmatpush1.xpose.msra.mxu0 0.0
        %997 = vmatprep.subr.mxu0 0.0
        %998 = vmatpush1.xpose.msra.mxu0 0.0
        %999 = vmatprep.subr.mxu0 0.0
        %1000 = vmatpush1.xpose.msra.mxu0 0.0
        %1001 = vmatprep.subr.mxu0 0.0
        %1002 = vmatpush1.xpose.msra.mxu0 0.0
        %1003 = vmatprep.subr.mxu0 0.0
        %1004 = vmatpush1.xpose.msra.mxu0 0.0
        %1005 = vmatprep.subr.mxu0 0.0
        %1006 = vmatpush1.xpose.msra.mxu0 0.0
        %1007 = vmatprep.subr.mxu0 0.0
        %1008 = vmatpush1.xpose.msra.mxu0 0.0
        %1009 = vmatprep.subr.mxu0 0.0
        %1010 = vmatpush1.xpose.msra.mxu0 0.0
        %1011 = vmatprep.subr.mxu0 0.0
        %1012 = vmatpush1.xpose.msra.mxu0 0.0
        %1013 = vmatprep.subr.mxu0 0.0
        %1014 = vmatpush1.xpose.msra.mxu0 0.0
        %1015 = vmatprep.subr.mxu0 0.0
        %1016 = vmatpush1.xpose.msra.mxu0 %v983
        %1017 = vmatprep.subr.mxu0 0.0
        %1018 = vmatpush2.xpose.msra.mxu0 0.0
        %1019 = vmatprep.subr.mxu0 0.0
        %1020 = vmatpush2.xpose.msra.mxu0 0.0
        %1021 = vmatprep.subr.mxu0 0.0
        %1022 = vmatpush2.xpose.msra.mxu0 0.0
        %1023 = vmatprep.subr.mxu0 0.0
        %1024 = vmatpush2.xpose.msra.mxu0 0.0
        %1025 = vmatprep.subr.mxu0 0.0
        %1026 = vmatpush2.xpose.msra.mxu0 0.0
        %1027 = vmatprep.subr.mxu0 0.0
        %1028 = vmatpush2.xpose.msra.mxu0 0.0
        %1029 = vmatprep.subr.mxu0 0.0
        %1030 = vmatpush2.xpose.msra.mxu0 0.0
        %1031 = vmatprep.subr.mxu0 0.0
        %1032 = vmatpush2.xpose.msra.mxu0 0.0
        %1033 = vmatprep.subr.mxu0 0.0
        %1034 = vmatpush2.xpose.msra.mxu0 0.0
        %1035 = vmatprep.subr.mxu0 0.0
        %1036 = vmatpush2.xpose.msra.mxu0 0.0
        %1037 = vmatprep.subr.mxu0 0.0
        %1038 = vmatpush2.xpose.msra.mxu0 0.0
        %1039 = vmatprep.subr.mxu0 0.0
        %1040 = vmatpush2.xpose.msra.mxu0 0.0
        %1041 = vmatprep.subr.mxu0 0.0
        %1042 = vmatpush2.xpose.msra.mxu0 0.0
        %1043 = vmatprep.subr.mxu0 0.0
        %1044 = vmatpush2.xpose.msra.mxu0 0.0
        %1045 = vmatprep.subr.mxu0 0.0
        %1046 = vmatpush2.xpose.msra.mxu0 0.0
        %1047 = vmatprep.subr.mxu0 0.0
        %1048 = vmatpush2.xpose.msra.mxu0 0.0
        %1049 = vmatprep.mubr.f32.mxu0 0.0
        %1050 = vmatmul.mubr.f32.gmra.mxu0 %v981
        %v1051 = vpop.f32.mrf.mxu0
        %v1052 = vadd.f32 0.0, %v1051
        %v1053 = vpop.f32.mrf.mxu0
        %1054 = vdwg.mxu0
        %v1055 = vsel %vm464, %v1052, -inf
        %1056 = vmax.xlane.f32.xlu0 %v1055
        %v1057 = vpop.xlane.xlu0 %1056
        %v1058 = vsub.f32 %v1052, %v1057
        %v1059 = vmul.f32 %v1058, 1.442695
        %v1060 = vpow.pop %v1059
        %v1061 = vsel %vm464, %v1060, 0.0
        %1062 = vadd.xlane.f32.xlu0 %v1061
        %v1063 = vpop.xlane.xlu0 %1062
        %1064 = vrot.lane.b32.xlu0 %v975, 72
        %v1065 = vpop.permute.xlu0 %1064
        %v1068 = vsel %vm464, %v1060, 0
        %1070 = vmatprep.subr.mxu0 0.0
        %1071 = vmatpush1.msra.mxu0 0.0
        %1072 = vmatprep.subr.mxu0 0.0
        %1073 = vmatpush1.msra.mxu0 0.0
        %1074 = vmatprep.subr.mxu0 0.0
        %1075 = vmatpush1.msra.mxu0 0.0
        %1076 = vmatprep.subr.mxu0 0.0
        %1077 = vmatpush1.msra.mxu0 0.0
        %1078 = vmatprep.subr.mxu0 0.0
        %1079 = vmatpush1.msra.mxu0 0.0
        %1080 = vmatprep.subr.mxu0 0.0
        %1081 = vmatpush1.msra.mxu0 0.0
        %1082 = vmatprep.subr.mxu0 0.0
        %1083 = vmatpush1.msra.mxu0 0.0
        %1084 = vmatprep.subr.mxu0 0.0
        %1085 = vmatpush1.msra.mxu0 0.0
        %1086 = vmatprep.subr.mxu0 0.0
        %1087 = vmatpush1.msra.mxu0 0.0
        %1088 = vmatprep.subr.mxu0 0.0
        %1089 = vmatpush1.msra.mxu0 0.0
        %1090 = vmatprep.subr.mxu0 0.0
        %1091 = vmatpush1.msra.mxu0 0.0
        %1092 = vmatprep.subr.mxu0 0.0
        %1093 = vmatpush1.msra.mxu0 0.0
        %1094 = vmatprep.subr.mxu0 0.0
        %1095 = vmatpush1.msra.mxu0 0.0
        %1096 = vmatprep.subr.mxu0 0.0
        %1097 = vmatpush1.msra.mxu0 0.0
        %1098 = vmatprep.subr.mxu0 0.0
        %1099 = vmatpush1.msra.mxu0 0.0
        %1100 = vmatprep.subr.mxu0 0.0
        %1101 = vmatpush1.msra.mxu0 %v1065
        %1102 = vmatprep.subr.mxu0 0.0
        %1103 = vmatpush2.msra.mxu0 0.0
        %1104 = vmatprep.subr.mxu0 0.0
        %1105 = vmatpush2.msra.mxu0 0.0
        %1106 = vmatprep.subr.mxu0 0.0
        %1107 = vmatpush2.msra.mxu0 0.0
        %1108 = vmatprep.subr.mxu0 0.0
        %1109 = vmatpush2.msra.mxu0 0.0
        %1110 = vmatprep.subr.mxu0 0.0
        %1111 = vmatpush2.msra.mxu0 0.0
        %1112 = vmatprep.subr.mxu0 0.0
        %1113 = vmatpush2.msra.mxu0 0.0
        %1114 = vmatprep.subr.mxu0 0.0
        %1115 = vmatpush2.msra.mxu0 0.0
        %1116 = vmatprep.subr.mxu0 0.0
        %1117 = vmatpush2.msra.mxu0 0.0
        %1118 = vmatprep.subr.mxu0 0.0
        %1119 = vmatpush2.msra.mxu0 0.0
        %1120 = vmatprep.subr.mxu0 0.0
        %1121 = vmatpush2.msra.mxu0 0.0
        %1122 = vmatprep.subr.mxu0 0.0
        %1123 = vmatpush2.msra.mxu0 0.0
        %1124 = vmatprep.subr.mxu0 0.0
        %1125 = vmatpush2.msra.mxu0 0.0
        %1126 = vmatprep.subr.mxu0 0.0
        %1127 = vmatpush2.msra.mxu0 0.0
        %1128 = vmatprep.subr.mxu0 0.0
        %1129 = vmatpush2.msra.mxu0 0.0
        %1130 = vmatprep.subr.mxu0 0.0
        %1131 = vmatpush2.msra.mxu0 0.0
        %1132 = vmatprep.subr.mxu0 0.0
        %1133 = vmatpush2.msra.mxu0 0.0
        %1134 = vmatprep.mubr.f32.mxu0 0.0
        %1135 = vmatmul.mubr.f32.gmra.mxu0 %v1068
        %v1136 = vpop.f32.mrf.mxu0
        %v1137 = vadd.f32 0.0, %v1136
        %v1138 = vpop.f32.mrf.mxu0
        %1139 = vdwg.mxu0
        %v1140 = vrcp.pop %v1063
        %v1141 = vmul.f32 %v1137, %v1140
        %1143 = vrot.lane.b32.xlu0 %v1141, 24
        %v1144 = vpop.permute.xlu0 %1143
        %vm1146 = vcmask 261312
        %1147 = vst.msk [vmem:[#allocation3] sm:$0xff] %vm1146, %v1144
        %v1148 = vld [vmem:[#allocation3] sm:$0xff]
        %1149 = vst.msk [vmem:[%s282] sm:$0xff] %vm389, %v1148
        %s1150 = sand.u32 %s155, 1
        %s1151 = scalar_lea.sflag [#allocation6], %s1150
        %s1152 = sand.u32 %s155, 1
        %s1153 = smul.addr %s1152, 8
        %s1154 = scalar_lea.vmem [#allocation10], %s1153
        // Predicated region
        $region57: #{tpu_custom_call.1} parent=39 // pred_check
          %p1155 = pneg %p165
        $region58: #{tpu_custom_call.1} parent=39 // pred_check_branch
          %1157 = sbr.rel (%p1155) target = $region60
        $region59: #{tpu_custom_call.1} parent=39 // pred_region
          %s1159 = ssub.s32 128, 128
          %1160 = vsyncadd %s1151, %s1159
          %s1161 = sadd.s32 %s28, %s27
          %s1162 = smul.addr %s1161, 128
          %s1163 = scalar_lea.hbm %s5, %s1162
          %s1165 = sshll.u32 %s1154, 4
          %s1166 = int_to_ptr.vmem [resolvable:$true] %s1165
          %1168 = dma.vmem_to_hbm [thread:$0]  %s1166, 128, %s1163, %s1151
        $region60: #{tpu_custom_call.1} parent=39 // pred_fallthru
          _
      $region40: #{tpu_custom_call.1} parent=5 // pred_fallthru
        _
      %p1169 = scmp.le.s32.totalorder 2, %s18
      // Predicated region
      $region61: #{tpu_custom_call.1} parent=5 // pred_check
        %p1170 = pneg %p1169
      $region62: #{tpu_custom_call.1} parent=5 // pred_check_branch
        %1172 = sbr.rel (%p1170) target = $region64
      $region63: #{tpu_custom_call.1} parent=5 // pred_region
        %s1173 = ssub.s32 %s18, 2
        // Predicated region
        $region65: #{tpu_custom_call.1} parent=63 // pred_check
          %p1174 = pneg %p171
        $region66: #{tpu_custom_call.1} parent=63 // pred_check_branch
          %1176 = sbr.rel (%p1174) target = $region68
        $region67: #{tpu_custom_call.1} parent=63 // pred_region
          %s1177 = sand.u32 %s156, 1
          %s1178 = scalar_lea.sflag [#allocation6], %s1177
          %s1179 = sand.u32 %s156, 1
          %s1180 = smul.addr %s1179, 8
          %s1181 = scalar_lea.vmem [#allocation10], %s1180
          %1182 = dma.done %s1178, 128
        $region68: #{tpu_custom_call.1} parent=63 // pred_fallthru
          _
      $region64: #{tpu_custom_call.1} parent=5 // pred_fallthru
        _
    $region6: #{tpu_custom_call.1} parent=1 // loop_footer
      %s22 = sadd.s32 1, %s18
    $region7: #{tpu_custom_call.1} parent=1 // loop_footer_branch
      %17 = sbr.rel target = $region3
    $region8: #{tpu_custom_call.1} parent=1 // loop_exit
      _
    %1183 = vsyncpa [#allocation5], 1
    %s1184 = scalar_lea.sflag [#allocation5], 1
    %1185 = vsyncpa %s1184, 1
    %1186 = vsyncpa [#allocation8], 1
    %1187 = vsyncpa [#allocation6], 1
    %s1188 = scalar_lea.sflag [#allocation6], 1
    %1189 = vsyncpa %s1188, 1

// kernel: tpu_custom_call.1
$region0: #{tpu_custom_call.1}
  #allocation0 [shape = 'u32[]', space=smem, size = 0x4, offset = 0x4, fixed_abs, tag = 'smem constant byte address 0x4 - core index']
  #allocation1 [shape = 'u32[144,128]{1,0:T(1,128)}', space=vmem, size = 0x12000, scoped, tag = 'internal scratch']
  #allocation2 [shape = 'f32[8,64]{1,0:T(8,128)}', space=vmem, size = 0x1000, scoped, tag = 'scratch operand']
  #allocation3 [shape = 'f32[8,32]{1,0:T(8,128)}', space=vmem, size = 0x1000, scoped, tag = 'scratch operand']
  %s0 = inlined_call_operand.hbm [shape: f32[2,8,32], index: 0, kind: input, shape index: {}]
  %s1 = inlined_call_operand.hbm [shape: f32[32,32], index: 1, kind: input, shape index: {}]
  %s2 = inlined_call_operand.vmem [shape: f32[1,32], index: 2, kind: input, shape index: {}]
  %s3 = inlined_call_operand.hbm [shape: f32[32,64], index: 3, kind: input, shape index: {}]
  %s4 = inlined_call_operand.vmem [shape: f32[1,64], index: 4, kind: input, shape index: {}]
  %s5 = inlined_call_operand.hbm [shape: f32[2,8,32], index: 5, kind: output, shape index: {}]
  %s6 = sld [smem:[#allocation0]]
  $region69: #{tpu_custom_call.1} parent=0
    _
  %s8 = ssub.s32 1, %s6
  %s9 = scalar_select 0, %s8, %s6
  $region1: #{tpu_custom_call.1} parent=0
    #allocation4 [shape = 'u8[8192]{0}', space=vmem, size = 0x2000, scoped, tag = 'input window, operand 0']
    #allocation5 [shape = 's32[2]{0}', space=sflag, size = 0x8, scoped, tag = 'scoped memory for tpu_custom_call.1']
    #allocation6 [shape = 's32[2]{0}', space=sflag, size = 0x8, scoped, tag = 'scoped memory for tpu_custom_call.1']
    #allocation7 [shape = 'u8[16384]{0}', space=vmem, size = 0x4000, scoped, tag = 'input window, operand 1, single buffered']
    #allocation8 [shape = 's32[1]{0}', space=sflag, size = 0x4, scoped, tag = 'scoped memory for tpu_custom_call.1']
    #allocation9 [shape = 'u8[16384]{0}', space=vmem, size = 0x4000, scoped, tag = 'input window, operand 3, single buffered']
    #allocation10 [shape = 'u8[8192]{0}', space=vmem, size = 0x2000, scoped, tag = 'output window, operand 0']
    %10 = vsyncpa [#allocation5], 0
    %s11 = scalar_lea.sflag [#allocation5], 1
    %12 = vsyncpa %s11, 0
    %13 = vsyncpa [#allocation8], 0
    %14 = vsyncpa [#allocation6], 0
    %s15 = scalar_lea.sflag [#allocation6], 1
    %16 = vsyncpa %s15, 0
    loop: start=0, step=1, limit=4
    $region2: #{tpu_custom_call.1} parent=1 // loop_pre_header
      _
    $region3: #{tpu_custom_call.1} parent=1 // loop_header
      %s18 = sphi 0, %s22
      %p19 = scmp.ge.s32.totalorder %s18, 4
      %s25 = sphi 0, %s37
      %s26 = sphi 0, %s33
      %s27 = sphi 0, %s25
      %s28 = sphi 0, %s26
      %s29 = sphi 0, %s27
      %s30 = sphi 0, %s28
      %s40 = sphi 0, %s42
      %s43 = sphi 0, %s40
      %s44 = sphi 0, %s43
      %s60 = sphi 0, %s44
      %s64 = sphi 0, %s64
      %s66 = sphi 0, %s64
      %s67 = sphi 0, %s66
      %s81 = sphi 0, %s67
      %s85 = sphi 0, %s85
      %s87 = sphi 0, %s85
      %s88 = sphi 0, %s87
      %s102 = sphi 0, %s88
      %s106 = sphi 0, %s106
      %s108 = sphi 0, %s106
      %s109 = sphi 0, %s108
      %s123 = sphi 0, %s109
      %s127 = sphi 0, %s127
      %s129 = sphi 0, %s127
      %s130 = sphi 0, %s129
      %s144 = sphi 0, %s130
      %s152 = sphi 0, %s154
      %s155 = sphi 0, %s152
      %s156 = sphi 0, %s155
      %s172 = sphi 0, %s156
    $region4: #{tpu_custom_call.1} parent=1 // loop_header_branch
      %21 = sbr.rel (%p19) target = $region8
    $region5: #{tpu_custom_call.1} parent=1 // loop_body
      %s23 = ssub.s32 %s18, 1
      %s24 = ssub.s32 %s18, 2
      %s31 = sadd.s32 1, %s26
      %p32 = scmp.ge.s32.totalorder %s31, 1
      %s33 = scalar_select %p32, 0, %s31
      %s34 = sadd.s32 1, %s25
      %s35 = scalar_select %p32, %s34, %s25
      %p36 = scmp.ge.s32.totalorder %s35, 2
      %s37 = scalar_select %p36, 0, %s35
      %s38 = ssub.s32 %s25, %s37
      %p39 = scmp.eq.s32.totalorder %s38, 0
      %s41 = sadd.s32 %s40, 1
      %s42 = scalar_select %p39, %s40, %s41
      %p45 = pneg %p39
      %p46 = scmp.eq.s32.totalorder %s18, 1
      %p47 = por %p45, %p46
      %p48 = scmp.ne.s32.totalorder %s40, %s43
      %p49 = scmp.eq.s32.totalorder %s18, 0
      %p50 = por %p48, %p49
      %p51 = scmp.ne.s32.totalorder %s40, %s43
      %p52 = scmp.eq.s32.totalorder %s23, 1
      %p53 = por %p51, %p52
      %p54 = scmp.ne.s32.totalorder %s43, %s44
      %p55 = scmp.eq.s32.totalorder %s23, 0
      %p56 = por %p54, %p55
      %p57 = scmp.ne.s32.totalorder %s43, %s44
      %p58 = scmp.eq.s32.totalorder %s24, 1
      %p59 = por %p57, %p58
      %p61 = scmp.ne.s32.totalorder %s44, %s60
      %p62 = scmp.eq.s32.totalorder %s24, 0
      %p63 = por %p61, %p62
      %s65 = sadd.s32 %s64, 1
      %p68 = scmp.eq.s32.totalorder %s18, 1
      %p69 = scmp.ne.s32.totalorder %s64, %s66
      %p70 = scmp.eq.s32.totalorder %s18, 0
      %p71 = por %p69, %p70
      %p72 = scmp.ne.s32.totalorder %s64, %s66
      %p73 = scmp.eq.s32.totalorder %s23, 1
      %p74 = por %p72, %p73
      %p75 = scmp.ne.s32.totalorder %s66, %s67
      %p76 = scmp.eq.s32.totalorder %s23, 0
      %p77 = por %p75, %p76
      %p78 = scmp.ne.s32.totalorder %s66, %s67
      %p79 = scmp.eq.s32.totalorder %s24, 1
      %p80 = por %p78, %p79
      %p82 = scmp.ne.s32.totalorder %s67, %s81
      %p83 = scmp.eq.s32.totalorder %s24, 0
      %p84 = por %p82, %p83
      %s86 = sadd.s32 %s85, 1
      %p89 = scmp.eq.s32.totalorder %s18, 1
      %p90 = scmp.ne.s32.totalorder %s85, %s87
      %p91 = scmp.eq.s32.totalorder %s18, 0
      %p92 = por %p90, %p91
      %p93 = scmp.ne.s32.totalorder %s85, %s87
      %p94 = scmp.eq.s32.totalorder %s23, 1
      %p95 = por %p93, %p94
      %p96 = scmp.ne.s32.totalorder %s87, %s88
      %p97 = scmp.eq.s32.totalorder %s23, 0
      %p98 = por %p96, %p97
      %p99 = scmp.ne.s32.totalorder %s87, %s88
      %p100 = scmp.eq.s32.totalorder %s24, 1
      %p101 = por %p99, %p100
      %p103 = scmp.ne.s32.totalorder %s88, %s102
      %p104 = scmp.eq.s32.totalorder %s24, 0
      %p105 = por %p103, %p104
      %s107 = sadd.s32 %s106, 1
      %p110 = scmp.eq.s32.totalorder %s18, 1
      %p111 = scmp.ne.s32.totalorder %s106, %s108
      %p112 = scmp.eq.s32.totalorder %s18, 0
      %p113 = por %p111, %p112
      %p114 = scmp.ne.s32.totalorder %s106, %s108
      %p115 = scmp.eq.s32.totalorder %s23, 1
      %p116 = por %p114, %p115
      %p117 = scmp.ne.s32.totalorder %s108, %s109
      %p118 = scmp.eq.s32.totalorder %s23, 0
      %p119 = por %p117, %p118
      %p120 = scmp.ne.s32.totalorder %s108, %s109
      %p121 = scmp.eq.s32.totalorder %s24, 1
      %p122 = por %p120, %p121
      %p124 = scmp.ne.s32.totalorder %s109, %s123
      %p125 = scmp.eq.s32.totalorder %s24, 0
      %p126 = por %p124, %p125
      %s128 = sadd.s32 %s127, 1
      %p131 = scmp.eq.s32.totalorder %s18, 1
      %p132 = scmp.ne.s32.totalorder %s127, %s129
      %p133 = scmp.eq.s32.totalorder %s18, 0
      %p134 = por %p132, %p133
      %p135 = scmp.ne.s32.totalorder %s127, %s129
      %p136 = scmp.eq.s32.totalorder %s23, 1
      %p137 = por %p135, %p136
      %p138 = scmp.ne.s32.totalorder %s129, %s130
      %p139 = scmp.eq.s32.totalorder %s23, 0
      %p140 = por %p138, %p139
      %p141 = scmp.ne.s32.totalorder %s129, %s130
      %p142 = scmp.eq.s32.totalorder %s24, 1
      %p143 = por %p141, %p142
      %p145 = scmp.ne.s32.totalorder %s130, %s144
      %p146 = scmp.eq.s32.totalorder %s24, 0
      %p147 = por %p145, %p146
      %s148 = ssub.s32 %s25, %s37
      %s149 = ssub.s32 %s26, %s33
      %s150 = sor.u32 %s148, %s149
      %p151 = scmp.eq.s32.totalorder %s150, 0
      %s153 = sadd.s32 %s152, 1
      %s154 = scalar_select %p151, %s152, %s153
      %p157 = pneg %p151
      %p158 = scmp.eq.s32.totalorder %s18, 1
      %p159 = por %p157, %p158
      %p160 = scmp.ne.s32.totalorder %s152, %s155
      %p161 = scmp.eq.s32.totalorder %s18, 0
      %p162 = por %p160, %p161
      %p163 = scmp.ne.s32.totalorder %s152, %s155
      %p164 = scmp.eq.s32.totalorder %s23, 1
      %p165 = por %p163, %p164
      %p166 = scmp.ne.s32.totalorder %s155, %s156
      %p167 = scmp.eq.s32.totalorder %s23, 0
      %p168 = por %p166, %p167
      %p169 = scmp.ne.s32.totalorder %s155, %s156
      %p170 = scmp.eq.s32.totalorder %s24, 1
      %p171 = por %p169, %p170
      %p173 = scmp.ne.s32.totalorder %s156, %s172
      %p174 = scmp.eq.s32.totalorder %s24, 0
      %p175 = por %p173, %p174
      %p176 = scmp.le.s32.totalorder 1, %s18
      %p177 = scmp.lt.s32.totalorder %s18, 3
      %p178 = pnand %p176, %p177
      %p179 = pneg %p178
      // Predicated region
      $region9: #{tpu_custom_call.1} parent=5 // pred_check
        _
      $region10: #{tpu_custom_call.1} parent=5 // pred_check_branch
        %181 = sbr.rel (%p178) target = $region12
      $region11: #{tpu_custom_call.1} parent=5 // pred_region
        %s182 = ssub.s32 %s18, 1
        // Predicated region
        $region13: #{tpu_custom_call.1} parent=11 // pred_check
          %p183 = pneg %p77
        $region14: #{tpu_custom_call.1} parent=11 // pred_check_branch
          %185 = sbr.rel (%p183) target = $region16
        $region15: #{tpu_custom_call.1} parent=11 // pred_region
          %s187 = ssub.s32 512, 512
          %188 = vsyncadd [#allocation8], %s187
          %s189 = sshll.u32 [#allocation7], 4
          %s190 = int_to_ptr.vmem [resolvable:$true] %s189
          %195 = dma.hbm_to_vmem [thread:$0]  %s1, 512, %s190, [#allocation8], 128, 128, 8
        $region16: #{tpu_custom_call.1} parent=11 // pred_fallthru
          _
        // Predicated region
        $region17: #{tpu_custom_call.1} parent=11 // pred_check
          %p196 = pneg %p98
        $region18: #{tpu_custom_call.1} parent=11 // pred_check_branch
          %198 = sbr.rel (%p196) target = $region20
        $region19: #{tpu_custom_call.1} parent=11 // pred_region
          _
        $region20: #{tpu_custom_call.1} parent=11 // pred_fallthru
          _
        // Predicated region
        $region21: #{tpu_custom_call.1} parent=11 // pred_check
          %p199 = pneg %p119
        $region22: #{tpu_custom_call.1} parent=11 // pred_check_branch
          %201 = sbr.rel (%p199) target = $region24
        $region23: #{tpu_custom_call.1} parent=11 // pred_region
          %s203 = ssub.s32 512, 512
          %204 = vsyncadd [#allocation8], %s203
          %s205 = sshll.u32 [#allocation9], 4
          %s206 = int_to_ptr.vmem [resolvable:$true] %s205
          %211 = dma.hbm_to_vmem [thread:$0]  %s3, 512, %s206, [#allocation8], 128, 128, 8
        $region24: #{tpu_custom_call.1} parent=11 // pred_fallthru
          _
        // Predicated region
        $region25: #{tpu_custom_call.1} parent=11 // pred_check
          %p212 = pneg %p140
        $region26: #{tpu_custom_call.1} parent=11 // pred_check_branch
          %214 = sbr.rel (%p212) target = $region28
        $region27: #{tpu_custom_call.1} parent=11 // pred_region
          _
        $region28: #{tpu_custom_call.1} parent=11 // pred_fallthru
          _
      $region12: #{tpu_custom_call.1} parent=5 // pred_fallthru
        _
      %p215 = scmp.lt.s32.totalorder %s18, 2
      // Predicated region
      $region29: #{tpu_custom_call.1} parent=5 // pred_check
        %p216 = pneg %p215
      $region30: #{tpu_custom_call.1} parent=5 // pred_check_branch
        %218 = sbr.rel (%p216) target = $region32
      $region31: #{tpu_custom_call.1} parent=5 // pred_region
        // Predicated region
        $region33: #{tpu_custom_call.1} parent=31 // pred_check
          %p219 = pneg %p50
        $region34: #{tpu_custom_call.1} parent=31 // pred_check_branch
          %221 = sbr.rel (%p219) target = $region36
        $region35: #{tpu_custom_call.1} parent=31 // pred_region
          %s222 = sand.u32 %s40, 1
          %s223 = scalar_lea.sflag [#allocation5], %s222
          %s224 = sand.u32 %s40, 1
          %s225 = smul.addr %s224, 8
          %s226 = scalar_lea.vmem [#allocation4], %s225
          %s228 = ssub.s32 128, 128
          %229 = vsyncadd %s223, %s228
          %s230 = smul.addr %s25, 128
          %s231 = scalar_lea.hbm %s0, %s230
          %s233 = sshll.u32 %s226, 4
          %s234 = int_to_ptr.vmem [resolvable:$true] %s233
          %236 = dma.hbm_to_vmem [thread:$0]  %s231, 128, %s234, %s223
        $region36: #{tpu_custom_call.1} parent=31 // pred_fallthru
          _
      $region32: #{tpu_custom_call.1} parent=5 // pred_fallthru
        _
      %p237 = scmp.le.s32.totalorder 1, %s18
      %p238 = scmp.lt.s32.totalorder %s18, 3
      %p239 = pnand %p237, %p238
      %p240 = pneg %p239
      // Predicated region
      $region37: #{tpu_custom_call.1} parent=5 // pred_check
        _
      $region38: #{tpu_custom_call.1} parent=5 // pred_check_branch
        %242 = sbr.rel (%p239) target = $region40
      $region39: #{tpu_custom_call.1} parent=5 // pred_region
        %s243 = ssub.s32 %s18, 1
        %s244 = sand.u32 %s43, 1
        %s245 = scalar_lea.sflag [#allocation5], %s244
        %s246 = sand.u32 %s43, 1
        %s247 = smul.addr %s246, 8
        %s248 = scalar_lea.vmem [#allocation4], %s247
        // Predicated region
        $region41: #{tpu_custom_call.1} parent=39 // pred_check
          %p249 = pneg %p56
        $region42: #{tpu_custom_call.1} parent=39 // pred_check_branch
          %251 = sbr.rel (%p249) target = $region44
        $region43: #{tpu_custom_call.1} parent=39 // pred_region
          %252 = dma.done %s245, 128
        $region44: #{tpu_custom_call.1} parent=39 // pred_fallthru
          _
        // Predicated region
        $region45: #{tpu_custom_call.1} parent=39 // pred_check
          %p253 = pneg %p77
        $region46: #{tpu_custom_call.1} parent=39 // pred_check_branch
          %255 = sbr.rel (%p253) target = $region48
        $region47: #{tpu_custom_call.1} parent=39 // pred_region
          %256 = dma.done [#allocation8], 512
        $region48: #{tpu_custom_call.1} parent=39 // pred_fallthru
          _
        // Predicated region
        $region49: #{tpu_custom_call.1} parent=39 // pred_check
          %p257 = pneg %p119
        $region50: #{tpu_custom_call.1} parent=39 // pred_check_branch
          %259 = sbr.rel (%p257) target = $region52
        $region51: #{tpu_custom_call.1} parent=39 // pred_region
          %260 = dma.done [#allocation8], 512
        $region52: #{tpu_custom_call.1} parent=39 // pred_fallthru
          _
        %s261 = sand.u32 %s43, 1
        %s262 = scalar_lea.sflag [#allocation5], %s261
        %s263 = sand.u32 %s43, 1
        %s264 = smul.addr %s263, 8
        %s265 = scalar_lea.vmem [#allocation4], %s264
        %p266 = pneg %p56
        %p267 = pneg %p53
        %p268 = pneg %p77
        %p269 = pneg %p74
        %p270 = pneg %p98
        %p271 = pneg %p95
        %p272 = pneg %p119
        %p273 = pneg %p116
        %p274 = pneg %p140
        %p275 = pneg %p137
        %p276 = pneg %p168
        %p277 = pneg %p165
        %s278 = sand.u32 %s155, 1
        %s279 = scalar_lea.sflag [#allocation6], %s278
        %s280 = sand.u32 %s155, 1
        %s281 = smul.addr %s280, 8
        %s282 = scalar_lea.vmem [#allocation10], %s281
        %p283 = scmp.eq.s32.totalorder %s28, 0
        // Predicated region
        $region53: #{tpu_custom_call.1} parent=39 // pred_check
          %p284 = pneg %p283
        $region54: #{tpu_custom_call.1} parent=39 // pred_check_branch
          %286 = sbr.rel (%p284) target = $region56
        $region55: #{tpu_custom_call.1} parent=39 // pred_region
          %v287 = vld [vmem:[#allocation9] sm:$0xff]
          %v288 = vld [vmem:[#allocation9 + $0x8] sm:$0xff]
          %v289 = vld [vmem:[#allocation9 + $0x10] sm:$0xff]
          %v290 = vld [vmem:[#allocation9 + $0x18] sm:$0xff]
          %v291 = vld [vmem:[%s4] sm:$0x1]
          %v292 = vld [vmem:[%s248] sm:$0xff]
          %v294 = vlaneseq
          %v295 = vshrl.u32 %v294, 7
          %v296 = vsub.s32 0, %v295
          %v297 = vrot.slane %v291, %v296
          %vm299 = vcmask 261120
          %v301 = vsel %vm299, %v292, 0
          %303 = vmatprep.subr.mxu0 0.0
          %304 = vmatpush1.msra.mxu0 0.0
          %305 = vmatprep.subr.mxu0 0.0
          %306 = vmatpush1.msra.mxu0 0.0
          %307 = vmatprep.subr.mxu0 0.0
          %308 = vmatpush1.msra.mxu0 0.0
          %309 = vmatprep.subr.mxu0 0.0
          %310 = vmatpush1.msra.mxu0 0.0
          %311 = vmatprep.subr.mxu0 0.0
          %312 = vmatpush1.msra.mxu0 0.0
          %313 = vmatprep.subr.mxu0 0.0
          %314 = vmatpush1.msra.mxu0 0.0
          %315 = vmatprep.subr.mxu0 0.0
          %316 = vmatpush1.msra.mxu0 0.0
          %317 = vmatprep.subr.mxu0 0.0
          %318 = vmatpush1.msra.mxu0 0.0
          %319 = vmatprep.subr.mxu0 0.0
          %320 = vmatpush1.msra.mxu0 0.0
          %321 = vmatprep.subr.mxu0 0.0
          %322 = vmatpush1.msra.mxu0 0.0
          %323 = vmatprep.subr.mxu0 0.0
          %324 = vmatpush1.msra.mxu0 0.0
          %325 = vmatprep.subr.mxu0 0.0
          %326 = vmatpush1.msra.mxu0 0.0
          %327 = vmatprep.subr.mxu0 0.0
          %328 = vmatpush1.msra.mxu0 %v290
          %329 = vmatprep.subr.mxu0 0.0
          %330 = vmatpush1.msra.mxu0 %v289
          %331 = vmatprep.subr.mxu0 0.0
          %332 = vmatpush1.msra.mxu0 %v288
          %333 = vmatprep.subr.mxu0 0.0
          %334 = vmatpush1.msra.mxu0 %v287
          %335 = vmatprep.subr.mxu0 0.0
          %336 = vmatpush2.msra.mxu0 0.0
          %337 = vmatprep.subr.mxu0 0.0
          %338 = vmatpush2.msra.mxu0 0.0
          %339 = vmatprep.subr.mxu0 0.0
          %340 = vmatpush2.msra.mxu0 0.0
          %341 = vmatprep.subr.mxu0 0.0
          %342 = vmatpush2.msra.mxu0 0.0
          %343 = vmatprep.subr.mxu0 0.0
          %344 = vmatpush2.msra.mxu0 0.0
          %345 = vmatprep.subr.mxu0 0.0
          %346 = vmatpush2.msra.mxu0 0.0
          %347 = vmatprep.subr.mxu0 0.0
          %348 = vmatpush2.msra.mxu0 0.0
          %349 = vmatprep.subr.mxu0 0.0
          %350 = vmatpush2.msra.mxu0 0.0
          %351 = vmatprep.subr.mxu0 0.0
          %352 = vmatpush2.msra.mxu0 0.0
          %353 = vmatprep.subr.mxu0 0.0
          %354 = vmatpush2.msra.mxu0 0.0
          %355 = vmatprep.subr.mxu0 0.0
          %356 = vmatpush2.msra.mxu0 0.0
          %357 = vmatprep.subr.mxu0 0.0
          %358 = vmatpush2.msra.mxu0 0.0
          %359 = vmatprep.subr.mxu0 0.0
          %360 = vmatpush2.msra.mxu0 0.0
          %361 = vmatprep.subr.mxu0 0.0
          %362 = vmatpush2.msra.mxu0 0.0
          %363 = vmatprep.subr.mxu0 0.0
          %364 = vmatpush2.msra.mxu0 0.0
          %365 = vmatprep.subr.mxu0 0.0
          %366 = vmatpush2.msra.mxu0 0.0
          %367 = vmatprep.mubr.f32.mxu0 0.0
          %368 = vmatmul.mubr.f32.gmra.mxu0 %v301
          %v369 = vpop.f32.mrf.mxu0
          %v370 = vadd.f32 %v297, %v369
          %v371 = vpop.f32.mrf.mxu0
          %372 = vdwg.mxu0
          %vm373 = vcmask 523264
          %374 = vst.msk [vmem:[#allocation2] sm:$0xff] %vm373, %v370
        $region56: #{tpu_custom_call.1} parent=39 // pred_fallthru
          _
        %s375 = smul.u32 %s28, 8
        %s376 = scalar_lea.vmem %s248, %s375 [#allocation4]
        %v377 = vld [vmem:[%s376] sm:$0xff]
        %v378 = vld [vmem:[#allocation7] sm:$0xff]
        %v379 = vld [vmem:[#allocation7 + $0x8] sm:$0xff]
        %v380 = vld [vmem:[#allocation7 + $0x10] sm:$0xff]
        %v381 = vld [vmem:[#allocation7 + $0x18] sm:$0xff]
        %v382 = vld [vmem:[%s2] sm:$0x1]
        %v384 = vlaneseq
        %v385 = vshrl.u32 %v384, 7
        %v386 = vsub.s32 0, %v385
        %v387 = vrot.slane %v382, %v386
        %vm389 = vcmask 261120
        %v391 = vsel %vm389, %v377, 0
        %393 = vmatprep.subr.mxu0 0.0
        %394 = vmatpush1.msra.mxu0 0.0
        %395 = vmatprep.subr.mxu0 0.0
        %396 = vmatpush1.msra.mxu0 0.0
        %397 = vmatprep.subr.mxu0 0.0
        %398 = vmatpush1.msra.mxu0 0.0
        %399 = vmatprep.subr.mxu0 0.0
        %400 = vmatpush1.msra.mxu0 0.0
        %401 = vmatprep.subr.mxu0 0.0
        %402 = vmatpush1.msra.mxu0 0.0
        %403 = vmatprep.subr.mxu0 0.0
        %404 = vmatpush1.msra.mxu0 0.0
        %405 = vmatprep.subr.mxu0 0.0
        %406 = vmatpush1.msra.mxu0 0.0
        %407 = vmatprep.subr.mxu0 0.0
        %408 = vmatpush1.msra.mxu0 0.0
        %409 = vmatprep.subr.mxu0 0.0
        %410 = vmatpush1.msra.mxu0 0.0
        %411 = vmatprep.subr.mxu0 0.0
        %412 = vmatpush1.msra.mxu0 0.0
        %413 = vmatprep.subr.mxu0 0.0
        %414 = vmatpush1.msra.mxu0 0.0
        %415 = vmatprep.subr.mxu0 0.0
        %416 = vmatpush1.msra.mxu0 0.0
        %417 = vmatprep.subr.mxu0 0.0
        %418 = vmatpush1.msra.mxu0 %v381
        %419 = vmatprep.subr.mxu0 0.0
        %420 = vmatpush1.msra.mxu0 %v380
        %421 = vmatprep.subr.mxu0 0.0
        %422 = vmatpush1.msra.mxu0 %v379
        %423 = vmatprep.subr.mxu0 0.0
        %424 = vmatpush1.msra.mxu0 %v378
        %425 = vmatprep.subr.mxu0 0.0
        %426 = vmatpush2.msra.mxu0 0.0
        %427 = vmatprep.subr.mxu0 0.0
        %428 = vmatpush2.msra.mxu0 0.0
        %429 = vmatprep.subr.mxu0 0.0
        %430 = vmatpush2.msra.mxu0 0.0
        %431 = vmatprep.subr.mxu0 0.0
        %432 = vmatpush2.msra.mxu0 0.0
        %433 = vmatprep.subr.mxu0 0.0
        %434 = vmatpush2.msra.mxu0 0.0
        %435 = vmatprep.subr.mxu0 0.0
        %436 = vmatpush2.msra.mxu0 0.0
        %437 = vmatprep.subr.mxu0 0.0
        %438 = vmatpush2.msra.mxu0 0.0
        %439 = vmatprep.subr.mxu0 0.0
        %440 = vmatpush2.msra.mxu0 0.0
        %441 = vmatprep.subr.mxu0 0.0
        %442 = vmatpush2.msra.mxu0 0.0
        %443 = vmatprep.subr.mxu0 0.0
        %444 = vmatpush2.msra.mxu0 0.0
        %445 = vmatprep.subr.mxu0 0.0
        %446 = vmatpush2.msra.mxu0 0.0
        %447 = vmatprep.subr.mxu0 0.0
        %448 = vmatpush2.msra.mxu0 0.0
        %449 = vmatprep.subr.mxu0 0.0
        %450 = vmatpush2.msra.mxu0 0.0
        %451 = vmatprep.subr.mxu0 0.0
        %452 = vmatpush2.msra.mxu0 0.0
        %453 = vmatprep.subr.mxu0 0.0
        %454 = vmatpush2.msra.mxu0 0.0
        %455 = vmatprep.subr.mxu0 0.0
        %456 = vmatpush2.msra.mxu0 0.0
        %457 = vmatprep.mubr.f32.mxu0 0.0
        %458 = vmatmul.mubr.f32.gmra.mxu0 %v391
        %v459 = vpop.f32.mrf.mxu0
        %v460 = vadd.f32 %v387, %v459
        %v461 = vpop.f32.mrf.mxu0
        %462 = vdwg.mxu0
        %v463 = vld [vmem:[#allocation2] sm:$0xff]
        %vm464 = vcmask 64512
        %v466 = vsel %vm464, %v460, 0
        %v469 = vsel %vm464, %v463, 0
        %471 = vmatprep.subr.mxu0 0.0
        %472 = vmatpush1.xpose.msra.mxu0 0.0
        %473 = vmatprep.subr.mxu0 0.0
        %474 = vmatpush1.xpose.msra.mxu0 0.0
        %475 = vmatprep.subr.mxu0 0.0
        %476 = vmatpush1.xpose.msra.mxu0 0.0
        %477 = vmatprep.subr.mxu0 0.0
        %478 = vmatpush1.xpose.msra.mxu0 0.0
        %479 = vmatprep.subr.mxu0 0.0
        %480 = vmatpush1.xpose.msra.mxu0 0.0
        %481 = vmatprep.subr.mxu0 0.0
        %482 = vmatpush1.xpose.msra.mxu0 0.0
        %483 = vmatprep.subr.mxu0 0.0
        %484 = vmatpush1.xpose.msra.mxu0 0.0
        %485 = vmatprep.subr.mxu0 0.0
        %486 = vmatpush1.xpose.msra.mxu0 0.0
        %487 = vmatprep.subr.mxu0 0.0
        %488 = vmatpush1.xpose.msra.mxu0 0.0
        %489 = vmatprep.subr.mxu0 0.0
        %490 = vmatpush1.xpose.msra.mxu0 0.0
        %491 = vmatprep.subr.mxu0 0.0
        %492 = vmatpush1.xpose.msra.mxu0 0.0
        %493 = vmatprep.subr.mxu0 0.0
        %494 = vmatpush1.xpose.msra.mxu0 0.0
        %495 = vmatprep.subr.mxu0 0.0
        %496 = vmatpush1.xpose.msra.mxu0 0.0
        %497 = vmatprep.subr.mxu0 0.0
        %498 = vmatpush1.xpose.msra.mxu0 0.0
        %499 = vmatprep.subr.mxu0 0.0
        %500 = vmatpush1.xpose.msra.mxu0 0.0
        %501 = vmatprep.subr.mxu0 0.0
        %502 = vmatpush1.xpose.msra.mxu0 %v469
        %503 = vmatprep.subr.mxu0 0.0
        %504 = vmatpush2.xpose.msra.mxu0 0.0
        %505 = vmatprep.subr.mxu0 0.0
        %506 = vmatpush2.xpose.msra.mxu0 0.0
        %507 = vmatprep.subr.mxu0 0.0
        %508 = vmatpush2.xpose.msra.mxu0 0.0
        %509 = vmatprep.subr.mxu0 0.0
        %510 = vmatpush2.xpose.msra.mxu0 0.0
        %511 = vmatprep.subr.mxu0 0.0
        %512 = vmatpush2.xpose.msra.mxu0 0.0
        %513 = vmatprep.subr.mxu0 0.0
        %514 = vmatpush2.xpose.msra.mxu0 0.0
        %515 = vmatprep.subr.mxu0 0.0
        %516 = vmatpush2.xpose.msra.mxu0 0.0
        %517 = vmatprep.subr.mxu0 0.0
        %518 = vmatpush2.xpose.msra.mxu0 0.0
        %519 = vmatprep.subr.mxu0 0.0
        %520 = vmatpush2.xpose.msra.mxu0 0.0
        %521 = vmatprep.subr.mxu0 0.0
        %522 = vmatpush2.xpose.msra.mxu0 0.0
        %523 = vmatprep.subr.mxu0 0.0
        %524 = vmatpush2.xpose.msra.mxu0 0.0
        %525 = vmatprep.subr.mxu0 0.0
        %526 = vmatpush2.xpose.msra.mxu0 0.0
        %527 = vmatprep.subr.mxu0 0.0
        %528 = vmatpush2.xpose.msra.mxu0 0.0
        %529 = vmatprep.subr.mxu0 0.0
        %530 = vmatpush2.xpose.msra.mxu0 0.0
        %531 = vmatprep.subr.mxu0 0.0
        %532 = vmatpush2.xpose.msra.mxu0 0.0
        %533 = vmatprep.subr.mxu0 0.0
        %534 = vmatpush2.xpose.msra.mxu0 0.0
        %535 = vmatprep.mubr.f32.mxu0 0.0
        %536 = vmatmul.mubr.f32.gmra.mxu0 %v466
        %v537 = vpop.f32.mrf.mxu0
        %v538 = vadd.f32 0.0, %v537
        %v539 = vpop.f32.mrf.mxu0
        %540 = vdwg.mxu0
        %v541 = vsel %vm464, %v538, -inf
        %542 = vmax.xlane.f32.xlu0 %v541
        %v543 = vpop.xlane.xlu0 %542
        %v544 = vsub.f32 %v538, %v543
        %v545 = vmul.f32 %v544, 1.442695
        %v546 = vpow.pop %v545
        %v547 = vsel %vm464, %v546, 0.0
        %548 = vadd.xlane.f32.xlu0 %v547
        %v549 = vpop.xlane.xlu0 %548
        %550 = vrot.lane.b32.xlu0 %v463, 96
        %v551 = vpop.permute.xlu0 %550
        %v554 = vsel %vm464, %v546, 0
        %556 = vmatprep.subr.mxu0 0.0
        %557 = vmatpush1.msra.mxu0 0.0
        %558 = vmatprep.subr.mxu0 0.0
        %559 = vmatpush1.msra.mxu0 0.0
        %560 = vmatprep.subr.mxu0 0.0
        %561 = vmatpush1.msra.mxu0 0.0
        %562 = vmatprep.subr.mxu0 0.0
        %563 = vmatpush1.msra.mxu0 0.0
        %564 = vmatprep.subr.mxu0 0.0
        %565 = vmatpush1.msra.mxu0 0.0
        %566 = vmatprep.subr.mxu0 0.0
        %567 = vmatpush1.msra.mxu0 0.0
        %568 = vmatprep.subr.mxu0 0.0
        %569 = vmatpush1.msra.mxu0 0.0
        %570 = vmatprep.subr.mxu0 0.0
        %571 = vmatpush1.msra.mxu0 0.0
        %572 = vmatprep.subr.mxu0 0.0
        %573 = vmatpush1.msra.mxu0 0.0
        %574 = vmatprep.subr.mxu0 0.0
        %575 = vmatpush1.msra.mxu0 0.0
        %576 = vmatprep.subr.mxu0 0.0
        %577 = vmatpush1.msra.mxu0 0.0
        %578 = vmatprep.subr.mxu0 0.0
        %579 = vmatpush1.msra.mxu0 0.0
        %580 = vmatprep.subr.mxu0 0.0
        %581 = vmatpush1.msra.mxu0 0.0
        %582 = vmatprep.subr.mxu0 0.0
        %583 = vmatpush1.msra.mxu0 0.0
        %584 = vmatprep.subr.mxu0 0.0
        %585 = vmatpush1.msra.mxu0 0.0
        %586 = vmatprep.subr.mxu0 0.0
        %587 = vmatpush1.msra.mxu0 %v551
        %588 = vmatprep.subr.mxu0 0.0
        %589 = vmatpush2.msra.mxu0 0.0
        %590 = vmatprep.subr.mxu0 0.0
        %591 = vmatpush2.msra.mxu0 0.0
        %592 = vmatprep.subr.mxu0 0.0
        %593 = vmatpush2.msra.mxu0 0.0
        %594 = vmatprep.subr.mxu0 0.0
        %595 = vmatpush2.msra.mxu0 0.0
        %596 = vmatprep.subr.mxu0 0.0
        %597 = vmatpush2.msra.mxu0 0.0
        %598 = vmatprep.subr.mxu0 0.0
        %599 = vmatpush2.msra.mxu0 0.0
        %600 = vmatprep.subr.mxu0 0.0
        %601 = vmatpush2.msra.mxu0 0.0
        %602 = vmatprep.subr.mxu0 0.0
        %603 = vmatpush2.msra.mxu0 0.0
        %604 = vmatprep.subr.mxu0 0.0
        %605 = vmatpush2.msra.mxu0 0.0
        %606 = vmatprep.subr.mxu0 0.0
        %607 = vmatpush2.msra.mxu0 0.0
        %608 = vmatprep.subr.mxu0 0.0
        %609 = vmatpush2.msra.mxu0 0.0
        %610 = vmatprep.subr.mxu0 0.0
        %611 = vmatpush2.msra.mxu0 0.0
        %612 = vmatprep.subr.mxu0 0.0
        %613 = vmatpush2.msra.mxu0 0.0
        %614 = vmatprep.subr.mxu0 0.0
        %615 = vmatpush2.msra.mxu0 0.0
        %616 = vmatprep.subr.mxu0 0.0
        %617 = vmatpush2.msra.mxu0 0.0
        %618 = vmatprep.subr.mxu0 0.0
        %619 = vmatpush2.msra.mxu0 0.0
        %620 = vmatprep.mubr.f32.mxu0 0.0
        %621 = vmatmul.mubr.f32.gmra.mxu0 %v554
        %v622 = vpop.f32.mrf.mxu0
        %v623 = vadd.f32 0.0, %v622
        %v624 = vpop.f32.mrf.mxu0
        %625 = vdwg.mxu0
        %v626 = vrcp.pop %v549
        %v627 = vmul.f32 %v623, %v626
        %628 = vst.msk [vmem:[#allocation3] sm:$0xff] %vm464, %v627
        %v629 = vld [vmem:[#allocation2] sm:$0xff]
        %630 = vrot.lane.b32.xlu0 %v460, 120
        %v631 = vpop.permute.xlu0 %630
        %633 = vrot.lane.b32.xlu0 %v629, 120
        %v634 = vpop.permute.xlu0 %633
        %v635 = vsel %vm464, %v631, 0
        %v637 = vsel %vm464, %v634, 0
        %639 = vmatprep.subr.mxu0 0.0
        %640 = vmatpush1.xpose.msra.mxu0 0.0
        %641 = vmatprep.subr.mxu0 0.0
        %642 = vmatpush1.xpose.msra.mxu0 0.0
        %643 = vmatprep.subr.mxu0 0.0
        %644 = vmatpush1.xpose.msra.mxu0 0.0
        %645 = vmatprep.subr.mxu0 0.0
        %646 = vmatpush1.xpose.msra.mxu0 0.0
        %647 = vmatprep.subr.mxu0 0.0
        %648 = vmatpush1.xpose.msra.mxu0 0.0
        %649 = vmatprep.subr.mxu0 0.0
        %650 = vmatpush1.xpose.msra.mxu0 0.0
        %651 = vmatprep.subr.mxu0 0.0
        %652 = vmatpush1.xpose.msra.mxu0 0.0
        %653 = vmatprep.subr.mxu0 0.0
        %654 = vmatpush1.xpose.msra.mxu0 0.0
        %655 = vmatprep.subr.mxu0 0.0
        %656 = vmatpush1.xpose.msra.mxu0 0.0
        %657 = vmatprep.subr.mxu0 0.0
        %658 = vmatpush1.xpose.msra.mxu0 0.0
        %659 = vmatprep.subr.mxu0 0.0
        %660 = vmatpush1.xpose.msra.mxu0 0.0
        %661 = vmatprep.subr.mxu0 0.0
        %662 = vmatpush1.xpose.msra.mxu0 0.0
        %663 = vmatprep.subr.mxu0 0.0
        %664 = vmatpush1.xpose.msra.mxu0 0.0
        %665 = vmatprep.subr.mxu0 0.0
        %666 = vmatpush1.xpose.msra.mxu0 0.0
        %667 = vmatprep.subr.mxu0 0.0
        %668 = vmatpush1.xpose.msra.mxu0 0.0
        %669 = vmatprep.subr.mxu0 0.0
        %670 = vmatpush1.xpose.msra.mxu0 %v637
        %671 = vmatprep.subr.mxu0 0.0
        %672 = vmatpush2.xpose.msra.mxu0 0.0
        %673 = vmatprep.subr.mxu0 0.0
        %674 = vmatpush2.xpose.msra.mxu0 0.0
        %675 = vmatprep.subr.mxu0 0.0
        %676 = vmatpush2.xpose.msra.mxu0 0.0
        %677 = vmatprep.subr.mxu0 0.0
        %678 = vmatpush2.xpose.msra.mxu0 0.0
        %679 = vmatprep.subr.mxu0 0.0
        %680 = vmatpush2.xpose.msra.mxu0 0.0
        %681 = vmatprep.subr.mxu0 0.0
        %682 = vmatpush2.xpose.msra.mxu0 0.0
        %683 = vmatprep.subr.mxu0 0.0
        %684 = vmatpush2.xpose.msra.mxu0 0.0
        %685 = vmatprep.subr.mxu0 0.0
        %686 = vmatpush2.xpose.msra.mxu0 0.0
        %687 = vmatprep.subr.mxu0 0.0
        %688 = vmatpush2.xpose.msra.mxu0 0.0
        %689 = vmatprep.subr.mxu0 0.0
        %690 = vmatpush2.xpose.msra.mxu0 0.0
        %691 = vmatprep.subr.mxu0 0.0
        %692 = vmatpush2.xpose.msra.mxu0 0.0
        %693 = vmatprep.subr.mxu0 0.0
        %694 = vmatpush2.xpose.msra.mxu0 0.0
        %695 = vmatprep.subr.mxu0 0.0
        %696 = vmatpush2.xpose.msra.mxu0 0.0
        %697 = vmatprep.subr.mxu0 0.0
        %698 = vmatpush2.xpose.msra.mxu0 0.0
        %699 = vmatprep.subr.mxu0 0.0
        %700 = vmatpush2.xpose.msra.mxu0 0.0
        %701 = vmatprep.subr.mxu0 0.0
        %702 = vmatpush2.xpose.msra.mxu0 0.0
        %703 = vmatprep.mubr.f32.mxu0 0.0
        %704 = vmatmul.mubr.f32.gmra.mxu0 %v635
        %v705 = vpop.f32.mrf.mxu0
        %v706 = vadd.f32 0.0, %v705
        %v707 = vpop.f32.mrf.mxu0
        %708 = vdwg.mxu0
        %v709 = vsel %vm464, %v706, -inf
        %710 = vmax.xlane.f32.xlu0 %v709
        %v711 = vpop.xlane.xlu0 %710
        %v712 = vsub.f32 %v706, %v711
        %v713 = vmul.f32 %v712, 1.442695
        %v714 = vpow.pop %v713
        %v715 = vsel %vm464, %v714, 0.0
        %716 = vadd.xlane.f32.xlu0 %v715
        %v717 = vpop.xlane.xlu0 %716
        %718 = vrot.lane.b32.xlu0 %v629, 88
        %v719 = vpop.permute.xlu0 %718
        %v722 = vsel %vm464, %v714, 0
        %724 = vmatprep.subr.mxu0 0.0
        %725 = vmatpush1.msra.mxu0 0.0
        %726 = vmatprep.subr.mxu0 0.0
        %727 = vmatpush1.msra.mxu0 0.0
        %728 = vmatprep.subr.mxu0 0.0
        %729 = vmatpush1.msra.mxu0 0.0
        %730 = vmatprep.subr.mxu0 0.0
        %731 = vmatpush1.msra.mxu0 0.0
        %732 = vmatprep.subr.mxu0 0.0
        %733 = vmatpush1.msra.mxu0 0.0
        %734 = vmatprep.subr.mxu0 0.0
        %735 = vmatpush1.msra.mxu0 0.0
        %736 = vmatprep.subr.mxu0 0.0
        %737 = vmatpush1.msra.mxu0 0.0
        %738 = vmatprep.subr.mxu0 0.0
        %739 = vmatpush1.msra.mxu0 0.0
        %740 = vmatprep.subr.mxu0 0.0
        %741 = vmatpush1.msra.mxu0 0.0
        %742 = vmatprep.subr.mxu0 0.0
        %743 = vmatpush1.msra.mxu0 0.0
        %744 = vmatprep.subr.mxu0 0.0
        %745 = vmatpush1.msra.mxu0 0.0
        %746 = vmatprep.subr.mxu0 0.0
        %747 = vmatpush1.msra.mxu0 0.0
        %748 = vmatprep.subr.mxu0 0.0
        %749 = vmatpush1.msra.mxu0 0.0
        %750 = vmatprep.subr.mxu0 0.0
        %751 = vmatpush1.msra.mxu0 0.0
        %752 = vmatprep.subr.mxu0 0.0
        %753 = vmatpush1.msra.mxu0 0.0
        %754 = vmatprep.subr.mxu0 0.0
        %755 = vmatpush1.msra.mxu0 %v719
        %756 = vmatprep.subr.mxu0 0.0
        %757 = vmatpush2.msra.mxu0 0.0
        %758 = vmatprep.subr.mxu0 0.0
        %759 = vmatpush2.msra.mxu0 0.0
        %760 = vmatprep.subr.mxu0 0.0
        %761 = vmatpush2.msra.mxu0 0.0
        %762 = vmatprep.subr.mxu0 0.0
        %763 = vmatpush2.msra.mxu0 0.0
        %764 = vmatprep.subr.mxu0 0.0
        %765 = vmatpush2.msra.mxu0 0.0
        %766 = vmatprep.subr.mxu0 0.0
        %767 = vmatpush2.msra.mxu0 0.0
        %768 = vmatprep.subr.mxu0 0.0
        %769 = vmatpush2.msra.mxu0 0.0
        %770 = vmatprep.subr.mxu0 0.0
        %771 = vmatpush2.msra.mxu0 0.0
        %772 = vmatprep.subr.mxu0 0.0
        %773 = vmatpush2.msra.mxu0 0.0
        %774 = vmatprep.subr.mxu0 0.0
        %775 = vmatpush2.msra.mxu0 0.0
        %776 = vmatprep.subr.mxu0 0.0
        %777 = vmatpush2.msra.mxu0 0.0
        %778 = vmatprep.subr.mxu0 0.0
        %779 = vmatpush2.msra.mxu0 0.0
        %780 = vmatprep.subr.mxu0 0.0
        %781 = vmatpush2.msra.mxu0 0.0
        %782 = vmatprep.subr.mxu0 0.0
        %783 = vmatpush2.msra.mxu0 0.0
        %784 = vmatprep.subr.mxu0 0.0
        %785 = vmatpush2.msra.mxu0 0.0
        %786 = vmatprep.subr.mxu0 0.0
        %787 = vmatpush2.msra.mxu0 0.0
        %788 = vmatprep.mubr.f32.mxu0 0.0
        %789 = vmatmul.mubr.f32.gmra.mxu0 %v722
        %v790 = vpop.f32.mrf.mxu0
        %v791 = vadd.f32 0.0, %v790
        %v792 = vpop.f32.mrf.mxu0
        %793 = vdwg.mxu0
        %v794 = vrcp.pop %v717
        %v795 = vmul.f32 %v791, %v794
        %797 = vrot.lane.b32.xlu0 %v795, 8
        %v798 = vpop.permute.xlu0 %797
        %vm800 = vcmask 130112
        %801 = vst.msk [vmem:[#allocation3] sm:$0xff] %vm800, %v798
        %v802 = vld [vmem:[#allocation2] sm:$0xff]
        %803 = vrot.lane.b32.xlu0 %v460, 112
        %v804 = vpop.permute.xlu0 %803
        %806 = vrot.lane.b32.xlu0 %v802, 112
        %v807 = vpop.permute.xlu0 %806
        %v808 = vsel %vm464, %v804, 0
        %v810 = vsel %vm464, %v807, 0
        %812 = vmatprep.subr.mxu0 0.0
        %813 = vmatpush1.xpose.msra.mxu0 0.0
        %814 = vmatprep.subr.mxu0 0.0
        %815 = vmatpush1.xpose.msra.mxu0 0.0
        %816 = vmatprep.subr.mxu0 0.0
        %817 = vmatpush1.xpose.msra.mxu0 0.0
        %818 = vmatprep.subr.mxu0 0.0
        %819 = vmatpush1.xpose.msra.mxu0 0.0
        %820 = vmatprep.subr.mxu0 0.0
        %821 = vmatpush1.xpose.msra.mxu0 0.0
        %822 = vmatprep.subr.mxu0 0.0
        %823 = vmatpush1.xpose.msra.mxu0 0.0
        %824 = vmatprep.subr.mxu0 0.0
        %825 = vmatpush1.xpose.msra.mxu0 0.0
        %826 = vmatprep.subr.mxu0 0.0
        %827 = vmatpush1.xpose.msra.mxu0 0.0
        %828 = vmatprep.subr.mxu0 0.0
        %829 = vmatpush1.xpose.msra.mxu0 0.0
        %830 = vmatprep.subr.mxu0 0.0
        %831 = vmatpush1.xpose.msra.mxu0 0.0
        %832 = vmatprep.subr.mxu0 0.0
        %833 = vmatpush1.xpose.msra.mxu0 0.0
        %834 = vmatprep.subr.mxu0 0.0
        %835 = vmatpush1.xpose.msra.mxu0 0.0
        %836 = vmatprep.subr.mxu0 0.0
        %837 = vmatpush1.xpose.msra.mxu0 0.0
        %838 = vmatprep.subr.mxu0 0.0
        %839 = vmatpush1.xpose.msra.mxu0 0.0
        %840 = vmatprep.subr.mxu0 0.0
        %841 = vmatpush1.xpose.msra.mxu0 0.0
        %842 = vmatprep.subr.mxu0 0.0
        %843 = vmatpush1.xpose.msra.mxu0 %v810
        %844 = vmatprep.subr.mxu0 0.0
        %845 = vmatpush2.xpose.msra.mxu0 0.0
        %846 = vmatprep.subr.mxu0 0.0
        %847 = vmatpush2.xpose.msra.mxu0 0.0
        %848 = vmatprep.subr.mxu0 0.0
        %849 = vmatpush2.xpose.msra.mxu0 0.0
        %850 = vmatprep.subr.mxu0 0.0
        %851 = vmatpush2.xpose.msra.mxu0 0.0
        %852 = vmatprep.subr.mxu0 0.0
        %853 = vmatpush2.xpose.msra.mxu0 0.0
        %854 = vmatprep.subr.mxu0 0.0
        %855 = vmatpush2.xpose.msra.mxu0 0.0
        %856 = vmatprep.subr.mxu0 0.0
        %857 = vmatpush2.xpose.msra.mxu0 0.0
        %858 = vmatprep.subr.mxu0 0.0
        %859 = vmatpush2.xpose.msra.mxu0 0.0
        %860 = vmatprep.subr.mxu0 0.0
        %861 = vmatpush2.xpose.msra.mxu0 0.0
        %862 = vmatprep.subr.mxu0 0.0
        %863 = vmatpush2.xpose.msra.mxu0 0.0
        %864 = vmatprep.subr.mxu0 0.0
        %865 = vmatpush2.xpose.msra.mxu0 0.0
        %866 = vmatprep.subr.mxu0 0.0
        %867 = vmatpush2.xpose.msra.mxu0 0.0
        %868 = vmatprep.subr.mxu0 0.0
        %869 = vmatpush2.xpose.msra.mxu0 0.0
        %870 = vmatprep.subr.mxu0 0.0
        %871 = vmatpush2.xpose.msra.mxu0 0.0
        %872 = vmatprep.subr.mxu0 0.0
        %873 = vmatpush2.xpose.msra.mxu0 0.0
        %874 = vmatprep.subr.mxu0 0.0
        %875 = vmatpush2.xpose.msra.mxu0 0.0
        %876 = vmatprep.mubr.f32.mxu0 0.0
        %877 = vmatmul.mubr.f32.gmra.mxu0 %v808
        %v878 = vpop.f32.mrf.mxu0
        %v879 = vadd.f32 0.0, %v878
        %v880 = vpop.f32.mrf.mxu0
        %881 = vdwg.mxu0
        %v882 = vsel %vm464, %v879, -inf
        %883 = vmax.xlane.f32.xlu0 %v882
        %v884 = vpop.xlane.xlu0 %883
        %v885 = vsub.f32 %v879, %v884
        %v886 = vmul.f32 %v885, 1.442695
        %v887 = vpow.pop %v886
        %v888 = vsel %vm464, %v887, 0.0
        %889 = vadd.xlane.f32.xlu0 %v888
        %v890 = vpop.xlane.xlu0 %889
        %891 = vrot.lane.b32.xlu0 %v802, 80
        %v892 = vpop.permute.xlu0 %891
        %v895 = vsel %vm464, %v887, 0
        %897 = vmatprep.subr.mxu0 0.0
        %898 = vmatpush1.msra.mxu0 0.0
        %899 = vmatprep.subr.mxu0 0.0
        %900 = vmatpush1.msra.mxu0 0.0
        %901 = vmatprep.subr.mxu0 0.0
        %902 = vmatpush1.msra.mxu0 0.0
        %903 = vmatprep.subr.mxu0 0.0
        %904 = vmatpush1.msra.mxu0 0.0
        %905 = vmatprep.subr.mxu0 0.0
        %906 = vmatpush1.msra.mxu0 0.0
        %907 = vmatprep.subr.mxu0 0.0
        %908 = vmatpush1.msra.mxu0 0.0
        %909 = vmatprep.subr.mxu0 0.0
        %910 = vmatpush1.msra.mxu0 0.0
        %911 = vmatprep.subr.mxu0 0.0
        %912 = vmatpush1.msra.mxu0 0.0
        %913 = vmatprep.subr.mxu0 0.0
        %914 = vmatpush1.msra.mxu0 0.0
        %915 = vmatprep.subr.mxu0 0.0
        %916 = vmatpush1.msra.mxu0 0.0
        %917 = vmatprep.subr.mxu0 0.0
        %918 = vmatpush1.msra.mxu0 0.0
        %919 = vmatprep.subr.mxu0 0.0
        %920 = vmatpush1.msra.mxu0 0.0
        %921 = vmatprep.subr.mxu0 0.0
        %922 = vmatpush1.msra.mxu0 0.0
        %923 = vmatprep.subr.mxu0 0.0
        %924 = vmatpush1.msra.mxu0 0.0
        %925 = vmatprep.subr.mxu0 0.0
        %926 = vmatpush1.msra.mxu0 0.0
        %927 = vmatprep.subr.mxu0 0.0
        %928 = vmatpush1.msra.mxu0 %v892
        %929 = vmatprep.subr.mxu0 0.0
        %930 = vmatpush2.msra.mxu0 0.0
        %931 = vmatprep.subr.mxu0 0.0
        %932 = vmatpush2.msra.mxu0 0.0
        %933 = vmatprep.subr.mxu0 0.0
        %934 = vmatpush2.msra.mxu0 0.0
        %935 = vmatprep.subr.mxu0 0.0
        %936 = vmatpush2.msra.mxu0 0.0
        %937 = vmatprep.subr.mxu0 0.0
        %938 = vmatpush2.msra.mxu0 0.0
        %939 = vmatprep.subr.mxu0 0.0
        %940 = vmatpush2.msra.mxu0 0.0
        %941 = vmatprep.subr.mxu0 0.0
        %942 = vmatpush2.msra.mxu0 0.0
        %943 = vmatprep.subr.mxu0 0.0
        %944 = vmatpush2.msra.mxu0 0.0
        %945 = vmatprep.subr.mxu0 0.0
        %946 = vmatpush2.msra.mxu0 0.0
        %947 = vmatprep.subr.mxu0 0.0
        %948 = vmatpush2.msra.mxu0 0.0
        %949 = vmatprep.subr.mxu0 0.0
        %950 = vmatpush2.msra.mxu0 0.0
        %951 = vmatprep.subr.mxu0 0.0
        %952 = vmatpush2.msra.mxu0 0.0
        %953 = vmatprep.subr.mxu0 0.0
        %954 = vmatpush2.msra.mxu0 0.0
        %955 = vmatprep.subr.mxu0 0.0
        %956 = vmatpush2.msra.mxu0 0.0
        %957 = vmatprep.subr.mxu0 0.0
        %958 = vmatpush2.msra.mxu0 0.0
        %959 = vmatprep.subr.mxu0 0.0
        %960 = vmatpush2.msra.mxu0 0.0
        %961 = vmatprep.mubr.f32.mxu0 0.0
        %962 = vmatmul.mubr.f32.gmra.mxu0 %v895
        %v963 = vpop.f32.mrf.mxu0
        %v964 = vadd.f32 0.0, %v963
        %v965 = vpop.f32.mrf.mxu0
        %966 = vdwg.mxu0
        %v967 = vrcp.pop %v890
        %v968 = vmul.f32 %v964, %v967
        %970 = vrot.lane.b32.xlu0 %v968, 16
        %v971 = vpop.permute.xlu0 %970
        %vm973 = vcmask 195712
        %974 = vst.msk [vmem:[#allocation3] sm:$0xff] %vm973, %v971
        %v975 = vld [vmem:[#allocation2] sm:$0xff]
        %976 = vrot.lane.b32.xlu0 %v460, 104
        %v977 = vpop.permute.xlu0 %976
        %979 = vrot.lane.b32.xlu0 %v975, 104
        %v980 = vpop.permute.xlu0 %979
        %v981 = vsel %vm464, %v977, 0
        %v983 = vsel %vm464, %v980, 0
        %985 = vmatprep.subr.mxu0 0.0
        %986 = vmatpush1.xpose.msra.mxu0 0.0
        %987 = vmatprep.subr.mxu0 0.0
        %988 = vmatpush1.xpose.msra.mxu0 0.0
        %989 = vmatprep.subr.mxu0 0.0
        %990 = vmatpush1.xpose.msra.mxu0 0.0
        %991 = vmatprep.subr.mxu0 0.0
        %992 = vmatpush1.xpose.msra.mxu0 0.0
        %993 = vmatprep.subr.mxu0 0.0
        %994 = vmatpush1.xpose.msra.mxu0 0.0
        %995 = vmatprep.subr.mxu0 0.0
        %996 = vmatpush1.xpose.msra.mxu0 0.0
        %997 = vmatprep.subr.mxu0 0.0
        %998 = vmatpush1.xpose.msra.mxu0 0.0
        %999 = vmatprep.subr.mxu0 0.0
        %1000 = vmatpush1.xpose.msra.mxu0 0.0
        %1001 = vmatprep.subr.mxu0 0.0
        %1002 = vmatpush1.xpose.msra.mxu0 0.0
        %1003 = vmatprep.subr.mxu0 0.0
        %1004 = vmatpush1.xpose.msra.mxu0 0.0
        %1005 = vmatprep.subr.mxu0 0.0
        %1006 = vmatpush1.xpose.msra.mxu0 0.0
        %1007 = vmatprep.subr.mxu0 0.0
        %1008 = vmatpush1.xpose.msra.mxu0 0.0
        %1009 = vmatprep.subr.mxu0 0.0
        %1010 = vmatpush1.xpose.msra.mxu0 0.0
        %1011 = vmatprep.subr.mxu0 0.0
        %1012 = vmatpush1.xpose.msra.mxu0 0.0
        %1013 = vmatprep.subr.mxu0 0.0
        %1014 = vmatpush1.xpose.msra.mxu0 0.0
        %1015 = vmatprep.subr.mxu0 0.0
        %1016 = vmatpush1.xpose.msra.mxu0 %v983
        %1017 = vmatprep.subr.mxu0 0.0
        %1018 = vmatpush2.xpose.msra.mxu0 0.0
        %1019 = vmatprep.subr.mxu0 0.0
        %1020 = vmatpush2.xpose.msra.mxu0 0.0
        %1021 = vmatprep.subr.mxu0 0.0
        %1022 = vmatpush2.xpose.msra.mxu0 0.0
        %1023 = vmatprep.subr.mxu0 0.0
        %1024 = vmatpush2.xpose.msra.mxu0 0.0
        %1025 = vmatprep.subr.mxu0 0.0
        %1026 = vmatpush2.xpose.msra.mxu0 0.0
        %1027 = vmatprep.subr.mxu0 0.0
        %1028 = vmatpush2.xpose.msra.mxu0 0.0
        %1029 = vmatprep.subr.mxu0 0.0
        %1030 = vmatpush2.xpose.msra.mxu0 0.0
        %1031 = vmatprep.subr.mxu0 0.0
        %1032 = vmatpush2.xpose.msra.mxu0 0.0
        %1033 = vmatprep.subr.mxu0 0.0
        %1034 = vmatpush2.xpose.msra.mxu0 0.0
        %1035 = vmatprep.subr.mxu0 0.0
        %1036 = vmatpush2.xpose.msra.mxu0 0.0
        %1037 = vmatprep.subr.mxu0 0.0
        %1038 = vmatpush2.xpose.msra.mxu0 0.0
        %1039 = vmatprep.subr.mxu0 0.0
        %1040 = vmatpush2.xpose.msra.mxu0 0.0
        %1041 = vmatprep.subr.mxu0 0.0
        %1042 = vmatpush2.xpose.msra.mxu0 0.0
        %1043 = vmatprep.subr.mxu0 0.0
        %1044 = vmatpush2.xpose.msra.mxu0 0.0
        %1045 = vmatprep.subr.mxu0 0.0
        %1046 = vmatpush2.xpose.msra.mxu0 0.0
        %1047 = vmatprep.subr.mxu0 0.0
        %1048 = vmatpush2.xpose.msra.mxu0 0.0
        %1049 = vmatprep.mubr.f32.mxu0 0.0
        %1050 = vmatmul.mubr.f32.gmra.mxu0 %v981
        %v1051 = vpop.f32.mrf.mxu0
        %v1052 = vadd.f32 0.0, %v1051
        %v1053 = vpop.f32.mrf.mxu0
        %1054 = vdwg.mxu0
        %v1055 = vsel %vm464, %v1052, -inf
        %1056 = vmax.xlane.f32.xlu0 %v1055
        %v1057 = vpop.xlane.xlu0 %1056
        %v1058 = vsub.f32 %v1052, %v1057
        %v1059 = vmul.f32 %v1058, 1.442695
        %v1060 = vpow.pop %v1059
        %v1061 = vsel %vm464, %v1060, 0.0
        %1062 = vadd.xlane.f32.xlu0 %v1061
        %v1063 = vpop.xlane.xlu0 %1062
        %1064 = vrot.lane.b32.xlu0 %v975, 72
        %v1065 = vpop.permute.xlu0 %1064
        %v1068 = vsel %vm464, %v1060, 0
        %1070 = vmatprep.subr.mxu0 0.0
        %1071 = vmatpush1.msra.mxu0 0.0
        %1072 = vmatprep.subr.mxu0 0.0
        %1073 = vmatpush1.msra.mxu0 0.0
        %1074 = vmatprep.subr.mxu0 0.0
        %1075 = vmatpush1.msra.mxu0 0.0
        %1076 = vmatprep.subr.mxu0 0.0
        %1077 = vmatpush1.msra.mxu0 0.0
        %1078 = vmatprep.subr.mxu0 0.0
        %1079 = vmatpush1.msra.mxu0 0.0
        %1080 = vmatprep.subr.mxu0 0.0
        %1081 = vmatpush1.msra.mxu0 0.0
        %1082 = vmatprep.subr.mxu0 0.0
        %1083 = vmatpush1.msra.mxu0 0.0
        %1084 = vmatprep.subr.mxu0 0.0
        %1085 = vmatpush1.msra.mxu0 0.0
        %1086 = vmatprep.subr.mxu0 0.0
        %1087 = vmatpush1.msra.mxu0 0.0
        %1088 = vmatprep.subr.mxu0 0.0
        %1089 = vmatpush1.msra.mxu0 0.0
        %1090 = vmatprep.subr.mxu0 0.0
        %1091 = vmatpush1.msra.mxu0 0.0
        %1092 = vmatprep.subr.mxu0 0.0
        %1093 = vmatpush1.msra.mxu0 0.0
        %1094 = vmatprep.subr.mxu0 0.0
        %1095 = vmatpush1.msra.mxu0 0.0
        %1096 = vmatprep.subr.mxu0 0.0
        %1097 = vmatpush1.msra.mxu0 0.0
        %1098 = vmatprep.subr.mxu0 0.0
        %1099 = vmatpush1.msra.mxu0 0.0
        %1100 = vmatprep.subr.mxu0 0.0
        %1101 = vmatpush1.msra.mxu0 %v1065
        %1102 = vmatprep.subr.mxu0 0.0
        %1103 = vmatpush2.msra.mxu0 0.0
        %1104 = vmatprep.subr.mxu0 0.0
        %1105 = vmatpush2.msra.mxu0 0.0
        %1106 = vmatprep.subr.mxu0 0.0
        %1107 = vmatpush2.msra.mxu0 0.0
        %1108 = vmatprep.subr.mxu0 0.0
        %1109 = vmatpush2.msra.mxu0 0.0
        %1110 = vmatprep.subr.mxu0 0.0
        %1111 = vmatpush2.msra.mxu0 0.0
        %1112 = vmatprep.subr.mxu0 0.0
        %1113 = vmatpush2.msra.mxu0 0.0
        %1114 = vmatprep.subr.mxu0 0.0
        %1115 = vmatpush2.msra.mxu0 0.0
        %1116 = vmatprep.subr.mxu0 0.0
        %1117 = vmatpush2.msra.mxu0 0.0
        %1118 = vmatprep.subr.mxu0 0.0
        %1119 = vmatpush2.msra.mxu0 0.0
        %1120 = vmatprep.subr.mxu0 0.0
        %1121 = vmatpush2.msra.mxu0 0.0
        %1122 = vmatprep.subr.mxu0 0.0
        %1123 = vmatpush2.msra.mxu0 0.0
        %1124 = vmatprep.subr.mxu0 0.0
        %1125 = vmatpush2.msra.mxu0 0.0
        %1126 = vmatprep.subr.mxu0 0.0
        %1127 = vmatpush2.msra.mxu0 0.0
        %1128 = vmatprep.subr.mxu0 0.0
        %1129 = vmatpush2.msra.mxu0 0.0
        %1130 = vmatprep.subr.mxu0 0.0
        %1131 = vmatpush2.msra.mxu0 0.0
        %1132 = vmatprep.subr.mxu0 0.0
        %1133 = vmatpush2.msra.mxu0 0.0
        %1134 = vmatprep.mubr.f32.mxu0 0.0
        %1135 = vmatmul.mubr.f32.gmra.mxu0 %v1068
        %v1136 = vpop.f32.mrf.mxu0
        %v1137 = vadd.f32 0.0, %v1136
        %v1138 = vpop.f32.mrf.mxu0
        %1139 = vdwg.mxu0
        %v1140 = vrcp.pop %v1063
        %v1141 = vmul.f32 %v1137, %v1140
        %1143 = vrot.lane.b32.xlu0 %v1141, 24
        %v1144 = vpop.permute.xlu0 %1143
        %vm1146 = vcmask 261312
        %1147 = vst.msk [vmem:[#allocation3] sm:$0xff] %vm1146, %v1144
        %v1148 = vld [vmem:[#allocation3] sm:$0xff]
        %1149 = vst.msk [vmem:[%s282] sm:$0xff] %vm389, %v1148
        %s1150 = sand.u32 %s155, 1
        %s1151 = scalar_lea.sflag [#allocation6], %s1150
        %s1152 = sand.u32 %s155, 1
        %s1153 = smul.addr %s1152, 8
        %s1154 = scalar_lea.vmem [#allocation10], %s1153
        // Predicated region
        $region57: #{tpu_custom_call.1} parent=39 // pred_check
          %p1155 = pneg %p165
        $region58: #{tpu_custom_call.1} parent=39 // pred_check_branch
          %1157 = sbr.rel (%p1155) target = $region60
        $region59: #{tpu_custom_call.1} parent=39 // pred_region
          %s1159 = ssub.s32 128, 128
          %1160 = vsyncadd %s1151, %s1159
          %s1161 = sadd.s32 %s28, %s27
          %s1162 = smul.addr %s1161, 128
          %s1163 = scalar_lea.hbm %s5, %s1162
          %s1165 = sshll.u32 %s1154, 4
          %s1166 = int_to_ptr.vmem [resolvable:$true] %s1165
          %1168 = dma.vmem_to_hbm [thread:$0]  %s1166, 128, %s1163, %s1151
        $region60: #{tpu_custom_call.1} parent=39 // pred_fallthru
          _
      $region40: #{tpu_custom_call.1} parent=5 // pred_fallthru
        _
      %p1169 = scmp.le.s32.totalorder 2, %s18
      // Predicated region
      $region61: #{tpu_custom_call.1} parent=5 // pred_check
        %p1170 = pneg %p1169
      $region62: #{tpu_custom_call.1} parent=5 // pred_check_branch
        %1172 = sbr.rel (%p1170) target = $region64
      $region63: #{tpu_custom_call.1} parent=5 // pred_region
        %s1173 = ssub.s32 %s18, 2
        // Predicated region
        $region65: #{tpu_custom_call.1} parent=63 // pred_check
          %p1174 = pneg %p171
        $region66: #{tpu_custom_call.1} parent=63 // pred_check_branch
          %1176 = sbr.rel (%p1174) target = $region68
        $region67: #{tpu_custom_call.1} parent=63 // pred_region
          %s1177 = sand.u32 %s156, 1
          %s1178 = scalar_lea.sflag [#allocation6], %s1177
          %s1179 = sand.u32 %s156, 1
          %s1180 = smul.addr %s1179, 8
          %s1181 = scalar_lea.vmem [#allocation10], %s1180
          %1182 = dma.done %s1178, 128
        $region68: #{tpu_custom_call.1} parent=63 // pred_fallthru
          _
      $region64: #{tpu_custom_call.1} parent=5 // pred_fallthru
        _
    $region6: #{tpu_custom_call.1} parent=1 // loop_footer
      %s22 = sadd.s32 1, %s18
    $region7: #{tpu_custom_call.1} parent=1 // loop_footer_branch
      %17 = sbr.rel target = $region3
    $region8: #{tpu_custom_call.1} parent=1 // loop_exit
      _
    %1183 = vsyncpa [#allocation5], 1
    %s1184 = scalar_lea.sflag [#allocation5], 1
    %1185 = vsyncpa %s1184, 1
    %1186 = vsyncpa [#allocation8], 1
    %1187 = vsyncpa [#allocation6], 1
    %s1188 = scalar_lea.sflag [#allocation6], 1
    %1189 = vsyncpa %s1188, 1

</llo_original>
